<compile_context>
chip_gen: v7x
topology: tpu7x:2x2x1
jax: 0.10.0
libtpu: 0.0.40
codegen_flags: <defaults>
</compile_context>

<pallas_src>
import functools
import math

import jax
import jax.numpy as jnp
from jax import lax
from jax.experimental import pallas as pl
from jax.experimental.pallas import tpu as pltpu

NEG_BIG = -1e30  # large finite negative; avoids NaN if a row ever becomes fully masked


# ----------------------------- Fused Pallas kernel -----------------------------

def _fused_mha_kernel(x_ref, wqkv_ref, wproj_ref, o_ref, *, num_heads, head_dim, causal):
    # x_ref block:    (1, N, d_in)   for one batch element
    # wqkv_ref block: (d_in, 3*d_out)  -- resident across the grid
    # wproj_ref block:(d_out, d_out)   -- resident across the grid
    # o_ref block:    (1, N, d_out)
    x = x_ref[0]                                             # (N, d_in)
    w_qkv = wqkv_ref[...]                                    # (d_in, 3*d_out)
    w_proj = wproj_ref[...]                                  # (d_out, d_out)

    d_out = num_heads * head_dim
    n = x.shape[0]
    scale = 1.0 / math.sqrt(head_dim)

    # qkv projection, kept in VMEM / vregs (lane-dense 3*d_out slab).
    qkv = jnp.dot(x, w_qkv, preferred_element_type=jnp.float32)   # (N, 3*d_out)

    q = qkv[:, 0 * d_out:1 * d_out] * scale                  # pre-scale q (N*d_out muls)
    k = qkv[:, 1 * d_out:2 * d_out]
    v = qkv[:, 2 * d_out:3 * d_out]

    if causal:
        row = lax.broadcasted_iota(jnp.int32, (n, n), 0)
        col = lax.broadcasted_iota(jnp.int32, (n, n), 1)
        causal_mask = row >= col                             # (N, N), hoisted out of head loop

    wproj_f32 = w_proj.astype(jnp.float32)

    # Per-head attention; head merge + out-proj fused as an accumulation so the
    # output is produced directly as a lane-dense (N, d_out) slab.
    acc = jnp.zeros((n, d_out), jnp.float32)
    for h in range(num_heads):                               # static unroll (num_heads small)
        sl = slice(h * head_dim, (h + 1) * head_dim)
        qh = q[:, sl]                                        # (N, Dh)
        kh = k[:, sl]
        vh = v[:, sl]

        s = jnp.dot(qh, kh.T, preferred_element_type=jnp.float32)   # (N, N)
        if causal:
            s = jnp.where(causal_mask, s, NEG_BIG)

        m = jnp.max(s, axis=-1, keepdims=True)
        p = jnp.exp(s - m)
        denom = jnp.sum(p, axis=-1, keepdims=True)
        attn = p * pl.reciprocal(denom, approx=True)         # EUP slot, effectively free

        ctx_h = jnp.dot(attn, vh, preferred_element_type=jnp.float32)        # (N, Dh)
        # merge-heads + proj:  out += ctx_h @ W_proj[h*Dh:(h+1)*Dh, :]
        acc = acc + jnp.dot(ctx_h, wproj_f32[sl, :], preferred_element_type=jnp.float32)

    o_ref[0] = acc.astype(o_ref.dtype)


def multi_head_attention(x, w_qkv, w_proj, *, num_heads, is_causal=True):
    """Fused equivalent of MultiHeadAttention.forward(x, jagged=True) on dense tensors.

    x:      (B, N, d_in)
    w_qkv:  (d_in, 3*d_out)   -- Linear(d_in, 3*d_out, bias=False), stored transposed
    w_proj: (d_out, d_out)    -- Linear(d_out, d_out, bias=False), stored transposed
    """
    B, N, d_in = x.shape
    d_out = w_qkv.shape[1] // 3
    assert d_out % num_heads == 0
    head_dim = d_out // num_heads

    kernel = functools.partial(
        _fused_mha_kernel, num_heads=num_heads, head_dim=head_dim, causal=is_causal
    )

    return pl.pallas_call(
        kernel,
        out_shape=jax.ShapeDtypeStruct((B, N, d_out), x.dtype),
        grid=(B,),
        in_specs=[
            pl.BlockSpec((1, N, d_in), lambda b: (b, 0, 0)),          # per-batch x slab
            pl.BlockSpec((d_in, 3 * d_out), lambda b: (0, 0)),        # weights resident in VMEM
            pl.BlockSpec((d_out, d_out), lambda b: (0, 0)),
        ],
        out_specs=pl.BlockSpec((1, N, d_out), lambda b: (b, 0, 0)),
        compiler_params=pltpu.CompilerParams(
            dimension_semantics=("parallel",),                        # shard batches across TCs (v7x)
        ),
    )(x, w_qkv, w_proj)


# ------------------------------ Reference ---------------------------------

def reference_mha(x, w_qkv, w_proj, *, num_heads, is_causal=True):
    B, N, d_in = x.shape
    d_out = w_qkv.shape[1] // 3
    head_dim = d_out // num_heads
    qkv = x @ w_qkv
    q, k, v = jnp.split(qkv, 3, axis=-1)

    def split_heads(t):
        return t.reshape(B, N, num_heads, head_dim).transpose(0, 2, 1, 3)

    q, k, v = split_heads(q), split_heads(k), split_heads(v)
    s = jnp.einsum("bhqd,bhkd->bhqk", q, k) / math.sqrt(head_dim)
    if is_causal:
        mask = jnp.tril(jnp.ones((N, N), dtype=bool))
        s = jnp.where(mask[None, None], s, -jnp.inf)
    p = jax.nn.softmax(s, axis=-1)
    ctx = jnp.einsum("bhqk,bhkd->bhqd", p, v)
    ctx = ctx.transpose(0, 2, 1, 3).reshape(B, N, d_out)
    return ctx @ w_proj


# -------------------------------- Main -------------------------------------

if __name__ == "__main__":
    # Small shapes consistent with the module: d_in = d_out = 32, 4 heads, head_dim = 8.
    B, N, d_in, d_out, num_heads = 2, 8, 32, 32, 4

    key = jax.random.PRNGKey(0)
    kx, kqkv, kproj = jax.random.split(key, 3)

    x = jax.random.normal(kx, (B, N, d_in), dtype=jnp.float32)
    # Deterministic "Linear" weights (bias=False as in the module defaults).
    w_qkv = jax.random.normal(kqkv, (d_in, 3 * d_out), dtype=jnp.float32) * (1.0 / math.sqrt(d_in))
    w_proj = jax.random.normal(kproj, (d_out, d_out), dtype=jnp.float32) * (1.0 / math.sqrt(d_out))

    out = multi_head_attention(x, w_qkv, w_proj, num_heads=num_heads, is_causal=True)
    out = jax.block_until_ready(out)

    ref = reference_mha(x, w_qkv, w_proj, num_heads=num_heads, is_causal=True)
    assert out.shape == (B, N, d_out)
    # approx reciprocal on the EUP is slightly lower precision than exact divide.
    assert jnp.allclose(out, ref, atol=5e-3, rtol=5e-3), "mismatch vs reference"

    # TODO(synk): KV-cache / NestedTensor (jagged) ragged-sequence paths and dropout are not
    # represented — the module asserts enable_kv_cache=False and runs in eval mode here.
    print("KERNEL_OK")
</pallas_src>

<mosaic_0001>
module attributes {stable_mosaic.version = 11 : i64} {
  func.func @_fused_mha_kernel(%arg0: i32, %arg1: memref<1x8x32xf32, #tpu.memory_space<vmem>>, %arg2: memref<32x96xf32, #tpu.memory_space<vmem>>, %arg3: memref<32x32xf32, #tpu.memory_space<vmem>>, %arg4: memref<1x8x32xf32, #tpu.memory_space<vmem>>) attributes {dimension_semantics = [#tpu.dimension_semantics<parallel>], iteration_bounds = array<i64: 2>, scalar_prefetch = 0 : i64, scratch_operands = 0 : i64, tpu.core_type = #tpu.core_type<tc>, window_params = [{transform_indices = @transform_0, window_bounds = array<i64: 1, 8, 32>}, {pipeline_mode = #tpu.pipeline_mode<synchronous>, transform_indices = @transform_1, window_bounds = array<i64: 32, 96>}, {pipeline_mode = #tpu.pipeline_mode<synchronous>, transform_indices = @transform_2, window_bounds = array<i64: 32, 32>}, {transform_indices = @transform_3, window_bounds = array<i64: 1, 8, 32>}]} {
    %c0 = arith.constant 0 : index
    %c0_0 = arith.constant 0 : index
    %c0_1 = arith.constant 0 : index
    %0 = vector.load %arg1[%c0, %c0_0, %c0_1] : memref<1x8x32xf32, #tpu.memory_space<vmem>>, vector<1x8x32xf32>
    %1 = vector.shape_cast %0 : vector<1x8x32xf32> to vector<8x32xf32>
    %c0_2 = arith.constant 0 : index
    %c0_3 = arith.constant 0 : index
    %2 = vector.load %arg2[%c0_2, %c0_3] : memref<32x96xf32, #tpu.memory_space<vmem>>, vector<32x96xf32>
    %c0_4 = arith.constant 0 : index
    %c0_5 = arith.constant 0 : index
    %3 = vector.load %arg3[%c0_4, %c0_5] : memref<32x32xf32, #tpu.memory_space<vmem>>, vector<32x32xf32>
    %cst = arith.constant dense<0.000000e+00> : vector<8x96xf32>
    %4 = tpu.matmul %1, %2, %cst {dimension_numbers = #tpu.dot_dimension_numbers<[1], [0], [0], [1], [0, 0, 1, 1], [], []>} : vector<8x32xf32>, vector<32x96xf32>, vector<8x96xf32> -> vector<8x96xf32>
    %5 = vector.extract_strided_slice %4 {offsets = [0, 0], sizes = [8, 32], strides = [1, 1]} : vector<8x96xf32> to vector<8x32xf32>
    %cst_6 = arith.constant 0.353553385 : f32
    %6 = vector.broadcast %cst_6 : f32 to vector<8x32xf32>
    %7 = arith.mulf %5, %6 : vector<8x32xf32>
    %8 = vector.extract_strided_slice %4 {offsets = [0, 32], sizes = [8, 32], strides = [1, 1]} : vector<8x96xf32> to vector<8x32xf32>
    %9 = vector.extract_strided_slice %4 {offsets = [0, 64], sizes = [8, 32], strides = [1, 1]} : vector<8x96xf32> to vector<8x32xf32>
    %10 = tpu.iota {dimensions = array<i32: 0>} : vector<8x8xi32>
    %11 = tpu.iota {dimensions = array<i32: 1>} : vector<8x8xi32>
    %12 = arith.cmpi sge, %10, %11 : vector<8x8xi32>
    %cst_7 = arith.constant 0.000000e+00 : f32
    %13 = vector.broadcast %cst_7 : f32 to vector<8x32xf32>
    %14 = vector.extract_strided_slice %7 {offsets = [0, 0], sizes = [8, 8], strides = [1, 1]} : vector<8x32xf32> to vector<8x8xf32>
    %15 = vector.extract_strided_slice %8 {offsets = [0, 0], sizes = [8, 8], strides = [1, 1]} : vector<8x32xf32> to vector<8x8xf32>
    %16 = vector.extract_strided_slice %9 {offsets = [0, 0], sizes = [8, 8], strides = [1, 1]} : vector<8x32xf32> to vector<8x8xf32>
    %17 = tpu.transpose %15, [1, 0] : vector<8x8xf32> -> vector<8x8xf32>
    %cst_8 = arith.constant dense<0.000000e+00> : vector<8x8xf32>
    %18 = tpu.matmul %14, %17, %cst_8 {dimension_numbers = #tpu.dot_dimension_numbers<[1], [0], [0], [1], [0, 0, 1, 1], [], []>} : vector<8x8xf32>, vector<8x8xf32>, vector<8x8xf32> -> vector<8x8xf32>
    %cst_9 = arith.constant -1.000000e+30 : f32
    %19 = vector.broadcast %cst_9 : f32 to vector<8x8xf32>
    %20 = arith.select %12, %18, %19 : vector<8x8xi1>, vector<8x8xf32>
    %cst_10 = arith.constant dense<0xFF800000> : vector<8xf32>
    %21 = vector.multi_reduction <maximumf>, %20, %cst_10 [1] : vector<8x8xf32> to vector<8xf32>
    %22 = vector.shape_cast %21 : vector<8xf32> to vector<8x1xf32>
    %23 = vector.broadcast %22 : vector<8x1xf32> to vector<8x8xf32>
    %24 = arith.subf %20, %23 : vector<8x8xf32>
    %25 = math.exp %24 : vector<8x8xf32>
    %cst_11 = arith.constant dense<0.000000e+00> : vector<8xf32>
    %26 = vector.multi_reduction <add>, %25, %cst_11 [1] : vector<8x8xf32> to vector<8xf32>
    %27 = vector.shape_cast %26 : vector<8xf32> to vector<8x1xf32>
    %28 = tpu.reciprocal %27 {approx = true} : vector<8x1xf32> -> vector<8x1xf32>
    %29 = vector.broadcast %28 : vector<8x1xf32> to vector<8x8xf32>
    %30 = arith.mulf %25, %29 : vector<8x8xf32>
    %cst_12 = arith.constant dense<0.000000e+00> : vector<8x8xf32>
    %31 = tpu.matmul %30, %16, %cst_12 {dimension_numbers = #tpu.dot_dimension_numbers<[1], [0], [0], [1], [0, 0, 1, 1], [], []>} : vector<8x8xf32>, vector<8x8xf32>, vector<8x8xf32> -> vector<8x8xf32>
    %32 = vector.extract_strided_slice %3 {offsets = [0, 0], sizes = [8, 32], strides = [1, 1]} : vector<32x32xf32> to vector<8x32xf32>
    %cst_13 = arith.constant dense<0.000000e+00> : vector<8x32xf32>
    %33 = tpu.matmul %31, %32, %cst_13 {dimension_numbers = #tpu.dot_dimension_numbers<[1], [0], [0], [1], [0, 0, 1, 1], [], []>} : vector<8x8xf32>, vector<8x32xf32>, vector<8x32xf32> -> vector<8x32xf32>
    %34 = arith.addf %13, %33 : vector<8x32xf32>
    %35 = vector.extract_strided_slice %7 {offsets = [0, 8], sizes = [8, 8], strides = [1, 1]} : vector<8x32xf32> to vector<8x8xf32>
    %36 = vector.extract_strided_slice %8 {offsets = [0, 8], sizes = [8, 8], strides = [1, 1]} : vector<8x32xf32> to vector<8x8xf32>
    %37 = vector.extract_strided_slice %9 {offsets = [0, 8], sizes = [8, 8], strides = [1, 1]} : vector<8x32xf32> to vector<8x8xf32>
    %38 = tpu.transpose %36, [1, 0] : vector<8x8xf32> -> vector<8x8xf32>
    %cst_14 = arith.constant dense<0.000000e+00> : vector<8x8xf32>
    %39 = tpu.matmul %35, %38, %cst_14 {dimension_numbers = #tpu.dot_dimension_numbers<[1], [0], [0], [1], [0, 0, 1, 1], [], []>} : vector<8x8xf32>, vector<8x8xf32>, vector<8x8xf32> -> vector<8x8xf32>
    %cst_15 = arith.constant -1.000000e+30 : f32
    %40 = vector.broadcast %cst_15 : f32 to vector<8x8xf32>
    %41 = arith.select %12, %39, %40 : vector<8x8xi1>, vector<8x8xf32>
    %cst_16 = arith.constant dense<0xFF800000> : vector<8xf32>
    %42 = vector.multi_reduction <maximumf>, %41, %cst_16 [1] : vector<8x8xf32> to vector<8xf32>
    %43 = vector.shape_cast %42 : vector<8xf32> to vector<8x1xf32>
    %44 = vector.broadcast %43 : vector<8x1xf32> to vector<8x8xf32>
    %45 = arith.subf %41, %44 : vector<8x8xf32>
    %46 = math.exp %45 : vector<8x8xf32>
    %cst_17 = arith.constant dense<0.000000e+00> : vector<8xf32>
    %47 = vector.multi_reduction <add>, %46, %cst_17 [1] : vector<8x8xf32> to vector<8xf32>
    %48 = vector.shape_cast %47 : vector<8xf32> to vector<8x1xf32>
    %49 = tpu.reciprocal %48 {approx = true} : vector<8x1xf32> -> vector<8x1xf32>
    %50 = vector.broadcast %49 : vector<8x1xf32> to vector<8x8xf32>
    %51 = arith.mulf %46, %50 : vector<8x8xf32>
    %cst_18 = arith.constant dense<0.000000e+00> : vector<8x8xf32>
    %52 = tpu.matmul %51, %37, %cst_18 {dimension_numbers = #tpu.dot_dimension_numbers<[1], [0], [0], [1], [0, 0, 1, 1], [], []>} : vector<8x8xf32>, vector<8x8xf32>, vector<8x8xf32> -> vector<8x8xf32>
    %53 = vector.extract_strided_slice %3 {offsets = [8, 0], sizes = [8, 32], strides = [1, 1]} : vector<32x32xf32> to vector<8x32xf32>
    %cst_19 = arith.constant dense<0.000000e+00> : vector<8x32xf32>
    %54 = tpu.matmul %52, %53, %cst_19 {dimension_numbers = #tpu.dot_dimension_numbers<[1], [0], [0], [1], [0, 0, 1, 1], [], []>} : vector<8x8xf32>, vector<8x32xf32>, vector<8x32xf32> -> vector<8x32xf32>
    %55 = arith.addf %34, %54 : vector<8x32xf32>
    %56 = vector.extract_strided_slice %7 {offsets = [0, 16], sizes = [8, 8], strides = [1, 1]} : vector<8x32xf32> to vector<8x8xf32>
    %57 = vector.extract_strided_slice %8 {offsets = [0, 16], sizes = [8, 8], strides = [1, 1]} : vector<8x32xf32> to vector<8x8xf32>
    %58 = vector.extract_strided_slice %9 {offsets = [0, 16], sizes = [8, 8], strides = [1, 1]} : vector<8x32xf32> to vector<8x8xf32>
    %59 = tpu.transpose %57, [1, 0] : vector<8x8xf32> -> vector<8x8xf32>
    %cst_20 = arith.constant dense<0.000000e+00> : vector<8x8xf32>
    %60 = tpu.matmul %56, %59, %cst_20 {dimension_numbers = #tpu.dot_dimension_numbers<[1], [0], [0], [1], [0, 0, 1, 1], [], []>} : vector<8x8xf32>, vector<8x8xf32>, vector<8x8xf32> -> vector<8x8xf32>
    %cst_21 = arith.constant -1.000000e+30 : f32
    %61 = vector.broadcast %cst_21 : f32 to vector<8x8xf32>
    %62 = arith.select %12, %60, %61 : vector<8x8xi1>, vector<8x8xf32>
    %cst_22 = arith.constant dense<0xFF800000> : vector<8xf32>
    %63 = vector.multi_reduction <maximumf>, %62, %cst_22 [1] : vector<8x8xf32> to vector<8xf32>
    %64 = vector.shape_cast %63 : vector<8xf32> to vector<8x1xf32>
    %65 = vector.broadcast %64 : vector<8x1xf32> to vector<8x8xf32>
    %66 = arith.subf %62, %65 : vector<8x8xf32>
    %67 = math.exp %66 : vector<8x8xf32>
    %cst_23 = arith.constant dense<0.000000e+00> : vector<8xf32>
    %68 = vector.multi_reduction <add>, %67, %cst_23 [1] : vector<8x8xf32> to vector<8xf32>
    %69 = vector.shape_cast %68 : vector<8xf32> to vector<8x1xf32>
    %70 = tpu.reciprocal %69 {approx = true} : vector<8x1xf32> -> vector<8x1xf32>
    %71 = vector.broadcast %70 : vector<8x1xf32> to vector<8x8xf32>
    %72 = arith.mulf %67, %71 : vector<8x8xf32>
    %cst_24 = arith.constant dense<0.000000e+00> : vector<8x8xf32>
    %73 = tpu.matmul %72, %58, %cst_24 {dimension_numbers = #tpu.dot_dimension_numbers<[1], [0], [0], [1], [0, 0, 1, 1], [], []>} : vector<8x8xf32>, vector<8x8xf32>, vector<8x8xf32> -> vector<8x8xf32>
    %74 = vector.extract_strided_slice %3 {offsets = [16, 0], sizes = [8, 32], strides = [1, 1]} : vector<32x32xf32> to vector<8x32xf32>
    %cst_25 = arith.constant dense<0.000000e+00> : vector<8x32xf32>
    %75 = tpu.matmul %73, %74, %cst_25 {dimension_numbers = #tpu.dot_dimension_numbers<[1], [0], [0], [1], [0, 0, 1, 1], [], []>} : vector<8x8xf32>, vector<8x32xf32>, vector<8x32xf32> -> vector<8x32xf32>
    %76 = arith.addf %55, %75 : vector<8x32xf32>
    %77 = vector.extract_strided_slice %7 {offsets = [0, 24], sizes = [8, 8], strides = [1, 1]} : vector<8x32xf32> to vector<8x8xf32>
    %78 = vector.extract_strided_slice %8 {offsets = [0, 24], sizes = [8, 8], strides = [1, 1]} : vector<8x32xf32> to vector<8x8xf32>
    %79 = vector.extract_strided_slice %9 {offsets = [0, 24], sizes = [8, 8], strides = [1, 1]} : vector<8x32xf32> to vector<8x8xf32>
    %80 = tpu.transpose %78, [1, 0] : vector<8x8xf32> -> vector<8x8xf32>
    %cst_26 = arith.constant dense<0.000000e+00> : vector<8x8xf32>
    %81 = tpu.matmul %77, %80, %cst_26 {dimension_numbers = #tpu.dot_dimension_numbers<[1], [0], [0], [1], [0, 0, 1, 1], [], []>} : vector<8x8xf32>, vector<8x8xf32>, vector<8x8xf32> -> vector<8x8xf32>
    %cst_27 = arith.constant -1.000000e+30 : f32
    %82 = vector.broadcast %cst_27 : f32 to vector<8x8xf32>
    %83 = arith.select %12, %81, %82 : vector<8x8xi1>, vector<8x8xf32>
    %cst_28 = arith.constant dense<0xFF800000> : vector<8xf32>
    %84 = vector.multi_reduction <maximumf>, %83, %cst_28 [1] : vector<8x8xf32> to vector<8xf32>
    %85 = vector.shape_cast %84 : vector<8xf32> to vector<8x1xf32>
    %86 = vector.broadcast %85 : vector<8x1xf32> to vector<8x8xf32>
    %87 = arith.subf %83, %86 : vector<8x8xf32>
    %88 = math.exp %87 : vector<8x8xf32>
    %cst_29 = arith.constant dense<0.000000e+00> : vector<8xf32>
    %89 = vector.multi_reduction <add>, %88, %cst_29 [1] : vector<8x8xf32> to vector<8xf32>
    %90 = vector.shape_cast %89 : vector<8xf32> to vector<8x1xf32>
    %91 = tpu.reciprocal %90 {approx = true} : vector<8x1xf32> -> vector<8x1xf32>
    %92 = vector.broadcast %91 : vector<8x1xf32> to vector<8x8xf32>
    %93 = arith.mulf %88, %92 : vector<8x8xf32>
    %cst_30 = arith.constant dense<0.000000e+00> : vector<8x8xf32>
    %94 = tpu.matmul %93, %79, %cst_30 {dimension_numbers = #tpu.dot_dimension_numbers<[1], [0], [0], [1], [0, 0, 1, 1], [], []>} : vector<8x8xf32>, vector<8x8xf32>, vector<8x8xf32> -> vector<8x8xf32>
    %95 = vector.extract_strided_slice %3 {offsets = [24, 0], sizes = [8, 32], strides = [1, 1]} : vector<32x32xf32> to vector<8x32xf32>
    %cst_31 = arith.constant dense<0.000000e+00> : vector<8x32xf32>
    %96 = tpu.matmul %94, %95, %cst_31 {dimension_numbers = #tpu.dot_dimension_numbers<[1], [0], [0], [1], [0, 0, 1, 1], [], []>} : vector<8x8xf32>, vector<8x32xf32>, vector<8x32xf32> -> vector<8x32xf32>
    %97 = arith.addf %76, %96 : vector<8x32xf32>
    %c0_32 = arith.constant 0 : index
    %c0_33 = arith.constant 0 : index
    %c0_34 = arith.constant 0 : index
    %98 = vector.load %arg4[%c0_32, %c0_33, %c0_34] : memref<1x8x32xf32, #tpu.memory_space<vmem>>, vector<1x8x32xf32>
    %99 = vector.shape_cast %98 : vector<1x8x32xf32> to vector<8x32xf32>
    %100 = vector.shape_cast %97 : vector<8x32xf32> to vector<1x8x32xf32>
    tpu.vector_store %arg4[%c0_32, %c0_33, %c0_34], %100 {strides = array<i32>} : memref<1x8x32xf32, #tpu.memory_space<vmem>>, vector<1x8x32xf32>,
    return
  }
  func.func @transform_0(%arg0: i32) -> (i32, i32, i32) {
    %c0_i32 = arith.constant 0 : i32
    %c0_i32_0 = arith.constant 0 : i32
    %c0_i32_1 = arith.constant 0 : i32
    return %arg0, %c0_i32, %c0_i32_0 : i32, i32, i32
  }
  func.func @transform_1(%arg0: i32) -> (i32, i32) {
    %c0_i32 = arith.constant 0 : i32
    %c0_i32_0 = arith.constant 0 : i32
    %c0_i32_1 = arith.constant 0 : i32
    return %c0_i32, %c0_i32_0 : i32, i32
  }
  func.func @transform_2(%arg0: i32) -> (i32, i32) {
    %c0_i32 = arith.constant 0 : i32
    %c0_i32_0 = arith.constant 0 : i32
    %c0_i32_1 = arith.constant 0 : i32
    return %c0_i32, %c0_i32_0 : i32, i32
  }
  func.func @transform_3(%arg0: i32) -> (i32, i32, i32) {
    %c0_i32 = arith.constant 0 : i32
    %c0_i32_0 = arith.constant 0 : i32
    %c0_i32_1 = arith.constant 0 : i32
    return %arg0, %c0_i32, %c0_i32_0 : i32, i32, i32
  }
}

</mosaic_0001>

<llo_original>
// kernel: tpu_custom_call.1
$region0: #{tpu_custom_call.1}
  #allocation0 [shape = 'u32[]', space=smem, size = 0x4, offset = 0x4, fixed_abs, tag = 'smem constant byte address 0x4 - core index']
  #allocation1 [shape = 'u32[144,128]{1,0:T(1,128)}', space=vmem, size = 0x12000, scoped, tag = 'internal scratch']
  %s0 = inlined_call_operand.hbm [shape: f32[2,8,32], index: 0, kind: input, shape index: {}]
  %s1 = inlined_call_operand.hbm [shape: f32[32,96], index: 1, kind: input, shape index: {}]
  %s2 = inlined_call_operand.hbm [shape: f32[32,32], index: 2, kind: input, shape index: {}]
  %s3 = inlined_call_operand.hbm [shape: f32[2,8,32], index: 3, kind: output, shape index: {}]
  %s4 = sld [smem:[#allocation0]]
  $region57: #{tpu_custom_call.1} parent=0
    _
  %s6 = ssub.s32 1, %s4
  %s7 = scalar_select 0, %s6, %s4
  $region1: #{tpu_custom_call.1} parent=0
    #allocation2 [shape = 'u8[8192]{0}', space=vmem, size = 0x2000, scoped, tag = 'input window, operand 0']
    #allocation3 [shape = 's32[2]{0}', space=sflag, size = 0x8, scoped, tag = 'scoped memory for tpu_custom_call.1']
    #allocation4 [shape = 's32[2]{0}', space=sflag, size = 0x8, scoped, tag = 'scoped memory for tpu_custom_call.1']
    #allocation5 [shape = 'u8[16384]{0}', space=vmem, size = 0x4000, scoped, tag = 'input window, operand 1, single buffered']
    #allocation6 [shape = 's32[1]{0}', space=sflag, size = 0x4, scoped, tag = 'scoped memory for tpu_custom_call.1']
    #allocation7 [shape = 'u8[16384]{0}', space=vmem, size = 0x4000, scoped, tag = 'input window, operand 2, single buffered']
    #allocation8 [shape = 'u8[8192]{0}', space=vmem, size = 0x2000, scoped, tag = 'output window, operand 0']
    %8 = vsyncpa [#allocation3], 0
    %s9 = scalar_lea.sflag [#allocation3], 1
    %10 = vsyncpa %s9, 0
    %11 = vsyncpa [#allocation6], 0
    %12 = vsyncpa [#allocation4], 0
    %s13 = scalar_lea.sflag [#allocation4], 1
    %14 = vsyncpa %s13, 0
    loop: start=0, step=1, limit=4
    $region2: #{tpu_custom_call.1} parent=1 // loop_pre_header
      _
    $region3: #{tpu_custom_call.1} parent=1 // loop_header
      %s16 = sphi 0, %s20
      %p17 = scmp.ge.s32.totalorder %s16, 4
      %s26 = sphi 0, %s28
      %s29 = sphi 0, %s26
      %s30 = sphi 0, %s29
      %s46 = sphi 0, %s30
      %s50 = sphi 0, %s50
      %s52 = sphi 0, %s50
      %s53 = sphi 0, %s52
      %s67 = sphi 0, %s53
      %s71 = sphi 0, %s71
      %s73 = sphi 0, %s71
      %s74 = sphi 0, %s73
      %s88 = sphi 0, %s74
      %s94 = sphi 0, %s96
      %s97 = sphi 0, %s94
      %s98 = sphi 0, %s97
      %s114 = sphi 0, %s98
    $region4: #{tpu_custom_call.1} parent=1 // loop_header_branch
      %19 = sbr.rel (%p17) target = $region8
    $region5: #{tpu_custom_call.1} parent=1 // loop_body
      %s21 = ssub.s32 %s16, 1
      %s22 = ssub.s32 %s16, 2
      %s23 = sadd.s32 %s16, 1
      %s24 = ssub.s32 %s16, %s23
      %p25 = scmp.eq.s32.totalorder %s24, 0
      %s27 = sadd.s32 %s26, 1
      %s28 = scalar_select %p25, %s26, %s27
      %p31 = pneg %p25
      %p32 = scmp.eq.s32.totalorder %s16, 1
      %p33 = por %p31, %p32
      %p34 = scmp.ne.s32.totalorder %s26, %s29
      %p35 = scmp.eq.s32.totalorder %s16, 0
      %p36 = por %p34, %p35
      %p37 = scmp.ne.s32.totalorder %s26, %s29
      %p38 = scmp.eq.s32.totalorder %s21, 1
      %p39 = por %p37, %p38
      %p40 = scmp.ne.s32.totalorder %s29, %s30
      %p41 = scmp.eq.s32.totalorder %s21, 0
      %p42 = por %p40, %p41
      %p43 = scmp.ne.s32.totalorder %s29, %s30
      %p44 = scmp.eq.s32.totalorder %s22, 1
      %p45 = por %p43, %p44
      %p47 = scmp.ne.s32.totalorder %s30, %s46
      %p48 = scmp.eq.s32.totalorder %s22, 0
      %p49 = por %p47, %p48
      %s51 = sadd.s32 %s50, 1
      %p54 = scmp.eq.s32.totalorder %s16, 1
      %p55 = scmp.ne.s32.totalorder %s50, %s52
      %p56 = scmp.eq.s32.totalorder %s16, 0
      %p57 = por %p55, %p56
      %p58 = scmp.ne.s32.totalorder %s50, %s52
      %p59 = scmp.eq.s32.totalorder %s21, 1
      %p60 = por %p58, %p59
      %p61 = scmp.ne.s32.totalorder %s52, %s53
      %p62 = scmp.eq.s32.totalorder %s21, 0
      %p63 = por %p61, %p62
      %p64 = scmp.ne.s32.totalorder %s52, %s53
      %p65 = scmp.eq.s32.totalorder %s22, 1
      %p66 = por %p64, %p65
      %p68 = scmp.ne.s32.totalorder %s53, %s67
      %p69 = scmp.eq.s32.totalorder %s22, 0
      %p70 = por %p68, %p69
      %s72 = sadd.s32 %s71, 1
      %p75 = scmp.eq.s32.totalorder %s16, 1
      %p76 = scmp.ne.s32.totalorder %s71, %s73
      %p77 = scmp.eq.s32.totalorder %s16, 0
      %p78 = por %p76, %p77
      %p79 = scmp.ne.s32.totalorder %s71, %s73
      %p80 = scmp.eq.s32.totalorder %s21, 1
      %p81 = por %p79, %p80
      %p82 = scmp.ne.s32.totalorder %s73, %s74
      %p83 = scmp.eq.s32.totalorder %s21, 0
      %p84 = por %p82, %p83
      %p85 = scmp.ne.s32.totalorder %s73, %s74
      %p86 = scmp.eq.s32.totalorder %s22, 1
      %p87 = por %p85, %p86
      %p89 = scmp.ne.s32.totalorder %s74, %s88
      %p90 = scmp.eq.s32.totalorder %s22, 0
      %p91 = por %p89, %p90
      %s92 = ssub.s32 %s16, %s23
      %p93 = scmp.eq.s32.totalorder %s92, 0
      %s95 = sadd.s32 %s94, 1
      %s96 = scalar_select %p93, %s94, %s95
      %p99 = pneg %p93
      %p100 = scmp.eq.s32.totalorder %s16, 1
      %p101 = por %p99, %p100
      %p102 = scmp.ne.s32.totalorder %s94, %s97
      %p103 = scmp.eq.s32.totalorder %s16, 0
      %p104 = por %p102, %p103
      %p105 = scmp.ne.s32.totalorder %s94, %s97
      %p106 = scmp.eq.s32.totalorder %s21, 1
      %p107 = por %p105, %p106
      %p108 = scmp.ne.s32.totalorder %s97, %s98
      %p109 = scmp.eq.s32.totalorder %s21, 0
      %p110 = por %p108, %p109
      %p111 = scmp.ne.s32.totalorder %s97, %s98
      %p112 = scmp.eq.s32.totalorder %s22, 1
      %p113 = por %p111, %p112
      %p115 = scmp.ne.s32.totalorder %s98, %s114
      %p116 = scmp.eq.s32.totalorder %s22, 0
      %p117 = por %p115, %p116
      %p118 = scmp.le.s32.totalorder 1, %s16
      %p119 = scmp.lt.s32.totalorder %s16, 3
      %p120 = pnand %p118, %p119
      %p121 = pneg %p120
      // Predicated region
      $region9: #{tpu_custom_call.1} parent=5 // pred_check
        _
      $region10: #{tpu_custom_call.1} parent=5 // pred_check_branch
        %123 = sbr.rel (%p120) target = $region12
      $region11: #{tpu_custom_call.1} parent=5 // pred_region
        %s124 = ssub.s32 %s16, 1
        // Predicated region
        $region13: #{tpu_custom_call.1} parent=11 // pred_check
          %p125 = pneg %p63
        $region14: #{tpu_custom_call.1} parent=11 // pred_check_branch
          %127 = sbr.rel (%p125) target = $region16
        $region15: #{tpu_custom_call.1} parent=11 // pred_region
          %s129 = ssub.s32 512, 512
          %130 = vsyncadd [#allocation6], %s129
          %s131 = sshll.u32 [#allocation5], 4
          %s132 = int_to_ptr.vmem [resolvable:$true] %s131
          %137 = dma.hbm_to_vmem [thread:$0]  %s1, 512, %s132, [#allocation6], 128, 128, 8
        $region16: #{tpu_custom_call.1} parent=11 // pred_fallthru
          _
        // Predicated region
        $region17: #{tpu_custom_call.1} parent=11 // pred_check
          %p138 = pneg %p84
        $region18: #{tpu_custom_call.1} parent=11 // pred_check_branch
          %140 = sbr.rel (%p138) target = $region20
        $region19: #{tpu_custom_call.1} parent=11 // pred_region
          %s142 = ssub.s32 512, 512
          %143 = vsyncadd [#allocation6], %s142
          %s144 = sshll.u32 [#allocation7], 4
          %s145 = int_to_ptr.vmem [resolvable:$true] %s144
          %150 = dma.hbm_to_vmem [thread:$0]  %s2, 512, %s145, [#allocation6], 128, 128, 8
        $region20: #{tpu_custom_call.1} parent=11 // pred_fallthru
          _
      $region12: #{tpu_custom_call.1} parent=5 // pred_fallthru
        _
      %p151 = scmp.lt.s32.totalorder %s16, 2
      // Predicated region
      $region21: #{tpu_custom_call.1} parent=5 // pred_check
        %p152 = pneg %p151
      $region22: #{tpu_custom_call.1} parent=5 // pred_check_branch
        %154 = sbr.rel (%p152) target = $region24
      $region23: #{tpu_custom_call.1} parent=5 // pred_region
        // Predicated region
        $region25: #{tpu_custom_call.1} parent=23 // pred_check
          %p155 = pneg %p36
        $region26: #{tpu_custom_call.1} parent=23 // pred_check_branch
          %157 = sbr.rel (%p155) target = $region28
        $region27: #{tpu_custom_call.1} parent=23 // pred_region
          %s158 = sand.u32 %s26, 1
          %s159 = scalar_lea.sflag [#allocation3], %s158
          %s160 = sand.u32 %s26, 1
          %s161 = smul.addr %s160, 8
          %s162 = scalar_lea.vmem [#allocation2], %s161
          %s164 = ssub.s32 128, 128
          %165 = vsyncadd %s159, %s164
          %s166 = smul.addr %s16, 128
          %s167 = scalar_lea.hbm %s0, %s166
          %s169 = sshll.u32 %s162, 4
          %s170 = int_to_ptr.vmem [resolvable:$true] %s169
          %172 = dma.hbm_to_vmem [thread:$0]  %s167, 128, %s170, %s159
        $region28: #{tpu_custom_call.1} parent=23 // pred_fallthru
          _
      $region24: #{tpu_custom_call.1} parent=5 // pred_fallthru
        _
      %p173 = scmp.le.s32.totalorder 1, %s16
      %p174 = scmp.lt.s32.totalorder %s16, 3
      %p175 = pnand %p173, %p174
      %p176 = pneg %p175
      // Predicated region
      $region29: #{tpu_custom_call.1} parent=5 // pred_check
        _
      $region30: #{tpu_custom_call.1} parent=5 // pred_check_branch
        %178 = sbr.rel (%p175) target = $region32
      $region31: #{tpu_custom_call.1} parent=5 // pred_region
        %s179 = ssub.s32 %s16, 1
        %s180 = sand.u32 %s29, 1
        %s181 = scalar_lea.sflag [#allocation3], %s180
        %s182 = sand.u32 %s29, 1
        %s183 = smul.addr %s182, 8
        %s184 = scalar_lea.vmem [#allocation2], %s183
        // Predicated region
        $region33: #{tpu_custom_call.1} parent=31 // pred_check
          %p185 = pneg %p42
        $region34: #{tpu_custom_call.1} parent=31 // pred_check_branch
          %187 = sbr.rel (%p185) target = $region36
        $region35: #{tpu_custom_call.1} parent=31 // pred_region
          %188 = dma.done %s181, 128
        $region36: #{tpu_custom_call.1} parent=31 // pred_fallthru
          _
        // Predicated region
        $region37: #{tpu_custom_call.1} parent=31 // pred_check
          %p189 = pneg %p63
        $region38: #{tpu_custom_call.1} parent=31 // pred_check_branch
          %191 = sbr.rel (%p189) target = $region40
        $region39: #{tpu_custom_call.1} parent=31 // pred_region
          %192 = dma.done [#allocation6], 512
        $region40: #{tpu_custom_call.1} parent=31 // pred_fallthru
          _
        // Predicated region
        $region41: #{tpu_custom_call.1} parent=31 // pred_check
          %p193 = pneg %p84
        $region42: #{tpu_custom_call.1} parent=31 // pred_check_branch
          %195 = sbr.rel (%p193) target = $region44
        $region43: #{tpu_custom_call.1} parent=31 // pred_region
          %196 = dma.done [#allocation6], 512
        $region44: #{tpu_custom_call.1} parent=31 // pred_fallthru
          _
        %s197 = sand.u32 %s29, 1
        %s198 = scalar_lea.sflag [#allocation3], %s197
        %s199 = sand.u32 %s29, 1
        %s200 = smul.addr %s199, 8
        %s201 = scalar_lea.vmem [#allocation2], %s200
        %p202 = pneg %p42
        %p203 = pneg %p39
        %p204 = pneg %p63
        %p205 = pneg %p60
        %p206 = pneg %p84
        %p207 = pneg %p81
        %p208 = pneg %p110
        %p209 = pneg %p107
        %s210 = sand.u32 %s97, 1
        %s211 = scalar_lea.sflag [#allocation4], %s210
        %s212 = sand.u32 %s97, 1
        %s213 = smul.addr %s212, 8
        %s214 = scalar_lea.vmem [#allocation8], %s213
        %v215 = vld [vmem:[%s184] sm:$0xff]
        %v216 = vld [vmem:[#allocation5] sm:$0xff]
        %v217 = vld [vmem:[#allocation5 + $0x8] sm:$0xff]
        %v218 = vld [vmem:[#allocation5 + $0x10] sm:$0xff]
        %v219 = vld [vmem:[#allocation5 + $0x18] sm:$0xff]
        %v220 = vld [vmem:[#allocation7] sm:$0xff]
        %v221 = vld [vmem:[#allocation7 + $0x8] sm:$0xff]
        %v222 = vld [vmem:[#allocation7 + $0x10] sm:$0xff]
        %v223 = vld [vmem:[#allocation7 + $0x18] sm:$0xff]
        %vm224 = vcmask 261120
        %v226 = vsel %vm224, %v215, 0
        %228 = vmatprep.subr.mxu0 0.0
        %229 = vmatpush1.msra.mxu0 %v216
        %230 = vmatprep.subr.mxu0 0.0
        %231 = vmatpush1.msra.mxu0 %v217
        %232 = vmatprep.subr.mxu0 0.0
        %233 = vmatpush1.msra.mxu0 %v218
        %234 = vmatprep.subr.mxu0 0.0
        %235 = vmatpush1.msra.mxu0 %v219
        %236 = vmatprep.subr.mxu0 0.0
        %237 = vmatpush1.msra.mxu0 0.0
        %238 = vmatprep.subr.mxu0 0.0
        %239 = vmatpush1.msra.mxu0 0.0
        %240 = vmatprep.subr.mxu0 0.0
        %241 = vmatpush1.msra.mxu0 0.0
        %242 = vmatprep.subr.mxu0 0.0
        %243 = vmatpush1.msra.mxu0 0.0
        %244 = vmatprep.subr.mxu0 0.0
        %245 = vmatpush1.msra.mxu0 0.0
        %246 = vmatprep.subr.mxu0 0.0
        %247 = vmatpush1.msra.mxu0 0.0
        %248 = vmatprep.subr.mxu0 0.0
        %249 = vmatpush1.msra.mxu0 0.0
        %250 = vmatprep.subr.mxu0 0.0
        %251 = vmatpush1.msra.mxu0 0.0
        %252 = vmatprep.subr.mxu0 0.0
        %253 = vmatpush1.msra.mxu0 0.0
        %254 = vmatprep.subr.mxu0 0.0
        %255 = vmatpush1.msra.mxu0 0.0
        %256 = vmatprep.subr.mxu0 0.0
        %257 = vmatpush1.msra.mxu0 0.0
        %258 = vmatprep.subr.mxu0 0.0
        %259 = vmatpush1.msra.mxu0 0.0
        %260 = vmatprep.subr.mxu0 0.0
        %261 = vmatpush1.msra.mxu0 0.0
        %262 = vmatprep.subr.mxu0 0.0
        %263 = vmatpush1.msra.mxu0 0.0
        %264 = vmatprep.subr.mxu0 0.0
        %265 = vmatpush1.msra.mxu0 0.0
        %266 = vmatprep.subr.mxu0 0.0
        %267 = vmatpush1.msra.mxu0 0.0
        %268 = vmatprep.subr.mxu0 0.0
        %269 = vmatpush1.msra.mxu0 0.0
        %270 = vmatprep.subr.mxu0 0.0
        %271 = vmatpush1.msra.mxu0 0.0
        %272 = vmatprep.subr.mxu0 0.0
        %273 = vmatpush1.msra.mxu0 0.0
        %274 = vmatprep.subr.mxu0 0.0
        %275 = vmatpush1.msra.mxu0 0.0
        %276 = vmatprep.subr.mxu0 0.0
        %277 = vmatpush1.msra.mxu0 0.0
        %278 = vmatprep.subr.mxu0 0.0
        %279 = vmatpush1.msra.mxu0 0.0
        %280 = vmatprep.subr.mxu0 0.0
        %281 = vmatpush1.msra.mxu0 0.0
        %282 = vmatprep.subr.mxu0 0.0
        %283 = vmatpush1.msra.mxu0 0.0
        %284 = vmatprep.subr.mxu0 0.0
        %285 = vmatpush1.msra.mxu0 0.0
        %286 = vmatprep.subr.mxu0 0.0
        %287 = vmatpush1.msra.mxu0 0.0
        %288 = vmatprep.subr.mxu0 0.0
        %289 = vmatpush1.msra.mxu0 0.0
        %290 = vmatprep.subr.mxu0 0.0
        %291 = vmatpush1.msra.mxu0 0.0
        %292 = vmatprep.mubr.f32.mxu0 0.0
        %293 = vmatmul.mubr.f32.gmra.mrb[0].mxu0 %v226
        %v294 = vpop.f32.mrb[0].mxu0
        %v295 = vadd.f32 0.0, %v294
        %v296 = vpop.f32.mrb[0].mxu0
        %297 = vdwg.mxu0
        %v298 = vmul.f32 %v295, 0.35355338
        %v299 = vlaneseq
        %v300 = vshrl.u32 %v299, 7
        %v301 = vlaneseq
        %v302 = vand.u32 %v301, 127
        %vm303 = vcmp.ge.s32.totalorder %v300, %v302
        %305 = vrot.lane.b32.xlu0 %v295, 96
        %v306 = vpop.permute.xlu0 %305
        %vm307 = vcmask 64512
        %v309 = vsel %vm307, %v298, 0
        %v311 = vsel %vm307, %v306, 0
        %313 = vmatprep.subr.mxu0 0.0
        %314 = vmatpush1.xpose.msra.mxu0 %v311
        %315 = vmatprep.subr.mxu0 0.0
        %316 = vmatpush1.xpose.msra.mxu0 0.0
        %317 = vmatprep.subr.mxu0 0.0
        %318 = vmatpush1.xpose.msra.mxu0 0.0
        %319 = vmatprep.subr.mxu0 0.0
        %320 = vmatpush1.xpose.msra.mxu0 0.0
        %321 = vmatprep.subr.mxu0 0.0
        %322 = vmatpush1.xpose.msra.mxu0 0.0
        %323 = vmatprep.subr.mxu0 0.0
        %324 = vmatpush1.xpose.msra.mxu0 0.0
        %325 = vmatprep.subr.mxu0 0.0
        %326 = vmatpush1.xpose.msra.mxu0 0.0
        %327 = vmatprep.subr.mxu0 0.0
        %328 = vmatpush1.xpose.msra.mxu0 0.0
        %329 = vmatprep.subr.mxu0 0.0
        %330 = vmatpush1.xpose.msra.mxu0 0.0
        %331 = vmatprep.subr.mxu0 0.0
        %332 = vmatpush1.xpose.msra.mxu0 0.0
        %333 = vmatprep.subr.mxu0 0.0
        %334 = vmatpush1.xpose.msra.mxu0 0.0
        %335 = vmatprep.subr.mxu0 0.0
        %336 = vmatpush1.xpose.msra.mxu0 0.0
        %337 = vmatprep.subr.mxu0 0.0
        %338 = vmatpush1.xpose.msra.mxu0 0.0
        %339 = vmatprep.subr.mxu0 0.0
        %340 = vmatpush1.xpose.msra.mxu0 0.0
        %341 = vmatprep.subr.mxu0 0.0
        %342 = vmatpush1.xpose.msra.mxu0 0.0
        %343 = vmatprep.subr.mxu0 0.0
        %344 = vmatpush1.xpose.msra.mxu0 0.0
        %345 = vmatprep.subr.mxu0 0.0
        %346 = vmatpush1.xpose.msra.mxu0 0.0
        %347 = vmatprep.subr.mxu0 0.0
        %348 = vmatpush1.xpose.msra.mxu0 0.0
        %349 = vmatprep.subr.mxu0 0.0
        %350 = vmatpush1.xpose.msra.mxu0 0.0
        %351 = vmatprep.subr.mxu0 0.0
        %352 = vmatpush1.xpose.msra.mxu0 0.0
        %353 = vmatprep.subr.mxu0 0.0
        %354 = vmatpush1.xpose.msra.mxu0 0.0
        %355 = vmatprep.subr.mxu0 0.0
        %356 = vmatpush1.xpose.msra.mxu0 0.0
        %357 = vmatprep.subr.mxu0 0.0
        %358 = vmatpush1.xpose.msra.mxu0 0.0
        %359 = vmatprep.subr.mxu0 0.0
        %360 = vmatpush1.xpose.msra.mxu0 0.0
        %361 = vmatprep.subr.mxu0 0.0
        %362 = vmatpush1.xpose.msra.mxu0 0.0
        %363 = vmatprep.subr.mxu0 0.0
        %364 = vmatpush1.xpose.msra.mxu0 0.0
        %365 = vmatprep.subr.mxu0 0.0
        %366 = vmatpush1.xpose.msra.mxu0 0.0
        %367 = vmatprep.subr.mxu0 0.0
        %368 = vmatpush1.xpose.msra.mxu0 0.0
        %369 = vmatprep.subr.mxu0 0.0
        %370 = vmatpush1.xpose.msra.mxu0 0.0
        %371 = vmatprep.subr.mxu0 0.0
        %372 = vmatpush1.xpose.msra.mxu0 0.0
        %373 = vmatprep.subr.mxu0 0.0
        %374 = vmatpush1.xpose.msra.mxu0 0.0
        %375 = vmatprep.subr.mxu0 0.0
        %376 = vmatpush1.xpose.msra.mxu0 0.0
        %377 = vmatprep.mubr.f32.mxu0 0.0
        %378 = vmatmul.mubr.f32.gmra.mrb[0].mxu0 %v309
        %v379 = vpop.f32.mrb[0].mxu0
        %v380 = vadd.f32 0.0, %v379
        %v381 = vpop.f32.mrb[0].mxu0
        %382 = vdwg.mxu0
        %v383 = vsel %vm303, %v380, -1e+30
        %v384 = vsel %vm307, %v383, -inf
        %385 = vmax.xlane.f32.xlu0 %v384
        %v386 = vpop.xlane.xlu0 %385
        %v387 = vsub.f32 %v383, %v386
        %v388 = vmul.f32 %v387, 1.442695
        %v389 = vpow.pop %v388
        %v390 = vsel %vm307, %v389, 0.0
        %391 = vadd.xlane.f32.xlu0 %v390
        %v392 = vpop.xlane.xlu0 %391
        %v393 = vrcp.pop %v392
        %v394 = vmul.f32 %v389, %v393
        %395 = vrot.lane.b32.xlu0 %v295, 64
        %v396 = vpop.permute.xlu0 %395
        %v399 = vsel %vm307, %v394, 0
        %401 = vmatprep.subr.mxu0 0.0
        %402 = vmatpush1.msra.mxu0 %v396
        %403 = vmatprep.subr.mxu0 0.0
        %404 = vmatpush1.msra.mxu0 0.0
        %405 = vmatprep.subr.mxu0 0.0
        %406 = vmatpush1.msra.mxu0 0.0
        %407 = vmatprep.subr.mxu0 0.0
        %408 = vmatpush1.msra.mxu0 0.0
        %409 = vmatprep.subr.mxu0 0.0
        %410 = vmatpush1.msra.mxu0 0.0
        %411 = vmatprep.subr.mxu0 0.0
        %412 = vmatpush1.msra.mxu0 0.0
        %413 = vmatprep.subr.mxu0 0.0
        %414 = vmatpush1.msra.mxu0 0.0
        %415 = vmatprep.subr.mxu0 0.0
        %416 = vmatpush1.msra.mxu0 0.0
        %417 = vmatprep.subr.mxu0 0.0
        %418 = vmatpush1.msra.mxu0 0.0
        %419 = vmatprep.subr.mxu0 0.0
        %420 = vmatpush1.msra.mxu0 0.0
        %421 = vmatprep.subr.mxu0 0.0
        %422 = vmatpush1.msra.mxu0 0.0
        %423 = vmatprep.subr.mxu0 0.0
        %424 = vmatpush1.msra.mxu0 0.0
        %425 = vmatprep.subr.mxu0 0.0
        %426 = vmatpush1.msra.mxu0 0.0
        %427 = vmatprep.subr.mxu0 0.0
        %428 = vmatpush1.msra.mxu0 0.0
        %429 = vmatprep.subr.mxu0 0.0
        %430 = vmatpush1.msra.mxu0 0.0
        %431 = vmatprep.subr.mxu0 0.0
        %432 = vmatpush1.msra.mxu0 0.0
        %433 = vmatprep.subr.mxu0 0.0
        %434 = vmatpush1.msra.mxu0 0.0
        %435 = vmatprep.subr.mxu0 0.0
        %436 = vmatpush1.msra.mxu0 0.0
        %437 = vmatprep.subr.mxu0 0.0
        %438 = vmatpush1.msra.mxu0 0.0
        %439 = vmatprep.subr.mxu0 0.0
        %440 = vmatpush1.msra.mxu0 0.0
        %441 = vmatprep.subr.mxu0 0.0
        %442 = vmatpush1.msra.mxu0 0.0
        %443 = vmatprep.subr.mxu0 0.0
        %444 = vmatpush1.msra.mxu0 0.0
        %445 = vmatprep.subr.mxu0 0.0
        %446 = vmatpush1.msra.mxu0 0.0
        %447 = vmatprep.subr.mxu0 0.0
        %448 = vmatpush1.msra.mxu0 0.0
        %449 = vmatprep.subr.mxu0 0.0
        %450 = vmatpush1.msra.mxu0 0.0
        %451 = vmatprep.subr.mxu0 0.0
        %452 = vmatpush1.msra.mxu0 0.0
        %453 = vmatprep.subr.mxu0 0.0
        %454 = vmatpush1.msra.mxu0 0.0
        %455 = vmatprep.subr.mxu0 0.0
        %456 = vmatpush1.msra.mxu0 0.0
        %457 = vmatprep.subr.mxu0 0.0
        %458 = vmatpush1.msra.mxu0 0.0
        %459 = vmatprep.subr.mxu0 0.0
        %460 = vmatpush1.msra.mxu0 0.0
        %461 = vmatprep.subr.mxu0 0.0
        %462 = vmatpush1.msra.mxu0 0.0
        %463 = vmatprep.subr.mxu0 0.0
        %464 = vmatpush1.msra.mxu0 0.0
        %465 = vmatprep.mubr.f32.mxu0 0.0
        %466 = vmatmul.mubr.f32.gmra.mrb[0].mxu0 %v399
        %v467 = vpop.f32.mrb[0].mxu0
        %v468 = vadd.f32 0.0, %v467
        %v469 = vpop.f32.mrb[0].mxu0
        %470 = vdwg.mxu0
        %471 = vrot.lane.b32.xlu0 %v298, 120
        %v472 = vpop.permute.xlu0 %471
        %473 = vrot.lane.b32.xlu0 %v295, 88
        %v474 = vpop.permute.xlu0 %473
        %v475 = vsel %vm307, %v472, 0
        %v477 = vsel %vm307, %v474, 0
        %479 = vmatprep.subr.mxu0 0.0
        %480 = vmatpush1.xpose.msra.mxu0 %v477
        %481 = vmatprep.subr.mxu0 0.0
        %482 = vmatpush1.xpose.msra.mxu0 0.0
        %483 = vmatprep.subr.mxu0 0.0
        %484 = vmatpush1.xpose.msra.mxu0 0.0
        %485 = vmatprep.subr.mxu0 0.0
        %486 = vmatpush1.xpose.msra.mxu0 0.0
        %487 = vmatprep.subr.mxu0 0.0
        %488 = vmatpush1.xpose.msra.mxu0 0.0
        %489 = vmatprep.subr.mxu0 0.0
        %490 = vmatpush1.xpose.msra.mxu0 0.0
        %491 = vmatprep.subr.mxu0 0.0
        %492 = vmatpush1.xpose.msra.mxu0 0.0
        %493 = vmatprep.subr.mxu0 0.0
        %494 = vmatpush1.xpose.msra.mxu0 0.0
        %495 = vmatprep.subr.mxu0 0.0
        %496 = vmatpush1.xpose.msra.mxu0 0.0
        %497 = vmatprep.subr.mxu0 0.0
        %498 = vmatpush1.xpose.msra.mxu0 0.0
        %499 = vmatprep.subr.mxu0 0.0
        %500 = vmatpush1.xpose.msra.mxu0 0.0
        %501 = vmatprep.subr.mxu0 0.0
        %502 = vmatpush1.xpose.msra.mxu0 0.0
        %503 = vmatprep.subr.mxu0 0.0
        %504 = vmatpush1.xpose.msra.mxu0 0.0
        %505 = vmatprep.subr.mxu0 0.0
        %506 = vmatpush1.xpose.msra.mxu0 0.0
        %507 = vmatprep.subr.mxu0 0.0
        %508 = vmatpush1.xpose.msra.mxu0 0.0
        %509 = vmatprep.subr.mxu0 0.0
        %510 = vmatpush1.xpose.msra.mxu0 0.0
        %511 = vmatprep.subr.mxu0 0.0
        %512 = vmatpush1.xpose.msra.mxu0 0.0
        %513 = vmatprep.subr.mxu0 0.0
        %514 = vmatpush1.xpose.msra.mxu0 0.0
        %515 = vmatprep.subr.mxu0 0.0
        %516 = vmatpush1.xpose.msra.mxu0 0.0
        %517 = vmatprep.subr.mxu0 0.0
        %518 = vmatpush1.xpose.msra.mxu0 0.0
        %519 = vmatprep.subr.mxu0 0.0
        %520 = vmatpush1.xpose.msra.mxu0 0.0
        %521 = vmatprep.subr.mxu0 0.0
        %522 = vmatpush1.xpose.msra.mxu0 0.0
        %523 = vmatprep.subr.mxu0 0.0
        %524 = vmatpush1.xpose.msra.mxu0 0.0
        %525 = vmatprep.subr.mxu0 0.0
        %526 = vmatpush1.xpose.msra.mxu0 0.0
        %527 = vmatprep.subr.mxu0 0.0
        %528 = vmatpush1.xpose.msra.mxu0 0.0
        %529 = vmatprep.subr.mxu0 0.0
        %530 = vmatpush1.xpose.msra.mxu0 0.0
        %531 = vmatprep.subr.mxu0 0.0
        %532 = vmatpush1.xpose.msra.mxu0 0.0
        %533 = vmatprep.subr.mxu0 0.0
        %534 = vmatpush1.xpose.msra.mxu0 0.0
        %535 = vmatprep.subr.mxu0 0.0
        %536 = vmatpush1.xpose.msra.mxu0 0.0
        %537 = vmatprep.subr.mxu0 0.0
        %538 = vmatpush1.xpose.msra.mxu0 0.0
        %539 = vmatprep.subr.mxu0 0.0
        %540 = vmatpush1.xpose.msra.mxu0 0.0
        %541 = vmatprep.subr.mxu0 0.0
        %542 = vmatpush1.xpose.msra.mxu0 0.0
        %543 = vmatprep.mubr.f32.mxu0 0.0
        %544 = vmatmul.mubr.f32.gmra.mrb[0].mxu0 %v475
        %v545 = vpop.f32.mrb[0].mxu0
        %v546 = vadd.f32 0.0, %v545
        %v547 = vpop.f32.mrb[0].mxu0
        %548 = vdwg.mxu0
        %v549 = vsel %vm303, %v546, -1e+30
        %v550 = vsel %vm307, %v549, -inf
        %551 = vmax.xlane.f32.xlu0 %v550
        %v552 = vpop.xlane.xlu0 %551
        %v553 = vsub.f32 %v549, %v552
        %v554 = vmul.f32 %v553, 1.442695
        %v555 = vpow.pop %v554
        %v556 = vsel %vm307, %v555, 0.0
        %557 = vadd.xlane.f32.xlu0 %v556
        %v558 = vpop.xlane.xlu0 %557
        %v559 = vrcp.pop %v558
        %v560 = vmul.f32 %v555, %v559
        %561 = vrot.lane.b32.xlu0 %v295, 56
        %v562 = vpop.permute.xlu0 %561
        %v565 = vsel %vm307, %v560, 0
        %567 = vmatprep.subr.mxu0 0.0
        %568 = vmatpush1.msra.mxu0 %v562
        %569 = vmatprep.subr.mxu0 0.0
        %570 = vmatpush1.msra.mxu0 0.0
        %571 = vmatprep.subr.mxu0 0.0
        %572 = vmatpush1.msra.mxu0 0.0
        %573 = vmatprep.subr.mxu0 0.0
        %574 = vmatpush1.msra.mxu0 0.0
        %575 = vmatprep.subr.mxu0 0.0
        %576 = vmatpush1.msra.mxu0 0.0
        %577 = vmatprep.subr.mxu0 0.0
        %578 = vmatpush1.msra.mxu0 0.0
        %579 = vmatprep.subr.mxu0 0.0
        %580 = vmatpush1.msra.mxu0 0.0
        %581 = vmatprep.subr.mxu0 0.0
        %582 = vmatpush1.msra.mxu0 0.0
        %583 = vmatprep.subr.mxu0 0.0
        %584 = vmatpush1.msra.mxu0 0.0
        %585 = vmatprep.subr.mxu0 0.0
        %586 = vmatpush1.msra.mxu0 0.0
        %587 = vmatprep.subr.mxu0 0.0
        %588 = vmatpush1.msra.mxu0 0.0
        %589 = vmatprep.subr.mxu0 0.0
        %590 = vmatpush1.msra.mxu0 0.0
        %591 = vmatprep.subr.mxu0 0.0
        %592 = vmatpush1.msra.mxu0 0.0
        %593 = vmatprep.subr.mxu0 0.0
        %594 = vmatpush1.msra.mxu0 0.0
        %595 = vmatprep.subr.mxu0 0.0
        %596 = vmatpush1.msra.mxu0 0.0
        %597 = vmatprep.subr.mxu0 0.0
        %598 = vmatpush1.msra.mxu0 0.0
        %599 = vmatprep.subr.mxu0 0.0
        %600 = vmatpush1.msra.mxu0 0.0
        %601 = vmatprep.subr.mxu0 0.0
        %602 = vmatpush1.msra.mxu0 0.0
        %603 = vmatprep.subr.mxu0 0.0
        %604 = vmatpush1.msra.mxu0 0.0
        %605 = vmatprep.subr.mxu0 0.0
        %606 = vmatpush1.msra.mxu0 0.0
        %607 = vmatprep.subr.mxu0 0.0
        %608 = vmatpush1.msra.mxu0 0.0
        %609 = vmatprep.subr.mxu0 0.0
        %610 = vmatpush1.msra.mxu0 0.0
        %611 = vmatprep.subr.mxu0 0.0
        %612 = vmatpush1.msra.mxu0 0.0
        %613 = vmatprep.subr.mxu0 0.0
        %614 = vmatpush1.msra.mxu0 0.0
        %615 = vmatprep.subr.mxu0 0.0
        %616 = vmatpush1.msra.mxu0 0.0
        %617 = vmatprep.subr.mxu0 0.0
        %618 = vmatpush1.msra.mxu0 0.0
        %619 = vmatprep.subr.mxu0 0.0
        %620 = vmatpush1.msra.mxu0 0.0
        %621 = vmatprep.subr.mxu0 0.0
        %622 = vmatpush1.msra.mxu0 0.0
        %623 = vmatprep.subr.mxu0 0.0
        %624 = vmatpush1.msra.mxu0 0.0
        %625 = vmatprep.subr.mxu0 0.0
        %626 = vmatpush1.msra.mxu0 0.0
        %627 = vmatprep.subr.mxu0 0.0
        %628 = vmatpush1.msra.mxu0 0.0
        %629 = vmatprep.subr.mxu0 0.0
        %630 = vmatpush1.msra.mxu0 0.0
        %631 = vmatprep.mubr.f32.mxu0 0.0
        %632 = vmatmul.mubr.f32.gmra.mrb[0].mxu0 %v565
        %v633 = vpop.f32.mrb[0].mxu0
        %v634 = vadd.f32 0.0, %v633
        %v635 = vpop.f32.mrb[0].mxu0
        %636 = vdwg.mxu0
        %v638 = vsel %vm307, %v634, 0
        %640 = vmatprep.subr.mxu0 0.0
        %641 = vmatpush1.msra.mxu0 %v221
        %642 = vmatprep.subr.mxu0 0.0
        %643 = vmatpush1.msra.mxu0 0.0
        %644 = vmatprep.subr.mxu0 0.0
        %645 = vmatpush1.msra.mxu0 0.0
        %646 = vmatprep.subr.mxu0 0.0
        %647 = vmatpush1.msra.mxu0 0.0
        %648 = vmatprep.subr.mxu0 0.0
        %649 = vmatpush1.msra.mxu0 0.0
        %650 = vmatprep.subr.mxu0 0.0
        %651 = vmatpush1.msra.mxu0 0.0
        %652 = vmatprep.subr.mxu0 0.0
        %653 = vmatpush1.msra.mxu0 0.0
        %654 = vmatprep.subr.mxu0 0.0
        %655 = vmatpush1.msra.mxu0 0.0
        %656 = vmatprep.subr.mxu0 0.0
        %657 = vmatpush1.msra.mxu0 0.0
        %658 = vmatprep.subr.mxu0 0.0
        %659 = vmatpush1.msra.mxu0 0.0
        %660 = vmatprep.subr.mxu0 0.0
        %661 = vmatpush1.msra.mxu0 0.0
        %662 = vmatprep.subr.mxu0 0.0
        %663 = vmatpush1.msra.mxu0 0.0
        %664 = vmatprep.subr.mxu0 0.0
        %665 = vmatpush1.msra.mxu0 0.0
        %666 = vmatprep.subr.mxu0 0.0
        %667 = vmatpush1.msra.mxu0 0.0
        %668 = vmatprep.subr.mxu0 0.0
        %669 = vmatpush1.msra.mxu0 0.0
        %670 = vmatprep.subr.mxu0 0.0
        %671 = vmatpush1.msra.mxu0 0.0
        %672 = vmatprep.subr.mxu0 0.0
        %673 = vmatpush1.msra.mxu0 0.0
        %674 = vmatprep.subr.mxu0 0.0
        %675 = vmatpush1.msra.mxu0 0.0
        %676 = vmatprep.subr.mxu0 0.0
        %677 = vmatpush1.msra.mxu0 0.0
        %678 = vmatprep.subr.mxu0 0.0
        %679 = vmatpush1.msra.mxu0 0.0
        %680 = vmatprep.subr.mxu0 0.0
        %681 = vmatpush1.msra.mxu0 0.0
        %682 = vmatprep.subr.mxu0 0.0
        %683 = vmatpush1.msra.mxu0 0.0
        %684 = vmatprep.subr.mxu0 0.0
        %685 = vmatpush1.msra.mxu0 0.0
        %686 = vmatprep.subr.mxu0 0.0
        %687 = vmatpush1.msra.mxu0 0.0
        %688 = vmatprep.subr.mxu0 0.0
        %689 = vmatpush1.msra.mxu0 0.0
        %690 = vmatprep.subr.mxu0 0.0
        %691 = vmatpush1.msra.mxu0 0.0
        %692 = vmatprep.subr.mxu0 0.0
        %693 = vmatpush1.msra.mxu0 0.0
        %694 = vmatprep.subr.mxu0 0.0
        %695 = vmatpush1.msra.mxu0 0.0
        %696 = vmatprep.subr.mxu0 0.0
        %697 = vmatpush1.msra.mxu0 0.0
        %698 = vmatprep.subr.mxu0 0.0
        %699 = vmatpush1.msra.mxu0 0.0
        %700 = vmatprep.subr.mxu0 0.0
        %701 = vmatpush1.msra.mxu0 0.0
        %702 = vmatprep.subr.mxu0 0.0
        %703 = vmatpush1.msra.mxu0 0.0
        %704 = vmatprep.mubr.f32.mxu0 0.0
        %705 = vmatmul.mubr.f32.gmra.mrb[0].mxu0 %v638
        %v706 = vpop.f32.mrb[0].mxu0
        %v707 = vadd.f32 0.0, %v706
        %v708 = vpop.f32.mrb[0].mxu0
        %709 = vdwg.mxu0
        %v711 = vsel %vm307, %v468, 0
        %713 = vmatprep.subr.mxu0 0.0
        %714 = vmatpush1.msra.mxu0 %v220
        %715 = vmatprep.subr.mxu0 0.0
        %716 = vmatpush1.msra.mxu0 0.0
        %717 = vmatprep.subr.mxu0 0.0
        %718 = vmatpush1.msra.mxu0 0.0
        %719 = vmatprep.subr.mxu0 0.0
        %720 = vmatpush1.msra.mxu0 0.0
        %721 = vmatprep.subr.mxu0 0.0
        %722 = vmatpush1.msra.mxu0 0.0
        %723 = vmatprep.subr.mxu0 0.0
        %724 = vmatpush1.msra.mxu0 0.0
        %725 = vmatprep.subr.mxu0 0.0
        %726 = vmatpush1.msra.mxu0 0.0
        %727 = vmatprep.subr.mxu0 0.0
        %728 = vmatpush1.msra.mxu0 0.0
        %729 = vmatprep.subr.mxu0 0.0
        %730 = vmatpush1.msra.mxu0 0.0
        %731 = vmatprep.subr.mxu0 0.0
        %732 = vmatpush1.msra.mxu0 0.0
        %733 = vmatprep.subr.mxu0 0.0
        %734 = vmatpush1.msra.mxu0 0.0
        %735 = vmatprep.subr.mxu0 0.0
        %736 = vmatpush1.msra.mxu0 0.0
        %737 = vmatprep.subr.mxu0 0.0
        %738 = vmatpush1.msra.mxu0 0.0
        %739 = vmatprep.subr.mxu0 0.0
        %740 = vmatpush1.msra.mxu0 0.0
        %741 = vmatprep.subr.mxu0 0.0
        %742 = vmatpush1.msra.mxu0 0.0
        %743 = vmatprep.subr.mxu0 0.0
        %744 = vmatpush1.msra.mxu0 0.0
        %745 = vmatprep.subr.mxu0 0.0
        %746 = vmatpush1.msra.mxu0 0.0
        %747 = vmatprep.subr.mxu0 0.0
        %748 = vmatpush1.msra.mxu0 0.0
        %749 = vmatprep.subr.mxu0 0.0
        %750 = vmatpush1.msra.mxu0 0.0
        %751 = vmatprep.subr.mxu0 0.0
        %752 = vmatpush1.msra.mxu0 0.0
        %753 = vmatprep.subr.mxu0 0.0
        %754 = vmatpush1.msra.mxu0 0.0
        %755 = vmatprep.subr.mxu0 0.0
        %756 = vmatpush1.msra.mxu0 0.0
        %757 = vmatprep.subr.mxu0 0.0
        %758 = vmatpush1.msra.mxu0 0.0
        %759 = vmatprep.subr.mxu0 0.0
        %760 = vmatpush1.msra.mxu0 0.0
        %761 = vmatprep.subr.mxu0 0.0
        %762 = vmatpush1.msra.mxu0 0.0
        %763 = vmatprep.subr.mxu0 0.0
        %764 = vmatpush1.msra.mxu0 0.0
        %765 = vmatprep.subr.mxu0 0.0
        %766 = vmatpush1.msra.mxu0 0.0
        %767 = vmatprep.subr.mxu0 0.0
        %768 = vmatpush1.msra.mxu0 0.0
        %769 = vmatprep.subr.mxu0 0.0
        %770 = vmatpush1.msra.mxu0 0.0
        %771 = vmatprep.subr.mxu0 0.0
        %772 = vmatpush1.msra.mxu0 0.0
        %773 = vmatprep.subr.mxu0 0.0
        %774 = vmatpush1.msra.mxu0 0.0
        %775 = vmatprep.subr.mxu0 0.0
        %776 = vmatpush1.msra.mxu0 0.0
        %777 = vmatprep.mubr.f32.mxu0 0.0
        %778 = vmatmul.mubr.f32.gmra.mrb[0].mxu0 %v711
        %v779 = vpop.f32.mrb[0].mxu0
        %v780 = vadd.f32 %v707, %v779
        %v781 = vpop.f32.mrb[0].mxu0
        %782 = vdwg.mxu0
        %783 = vrot.lane.b32.xlu0 %v298, 112
        %v784 = vpop.permute.xlu0 %783
        %785 = vrot.lane.b32.xlu0 %v295, 80
        %v786 = vpop.permute.xlu0 %785
        %v787 = vsel %vm307, %v784, 0
        %v789 = vsel %vm307, %v786, 0
        %791 = vmatprep.subr.mxu0 0.0
        %792 = vmatpush1.xpose.msra.mxu0 %v789
        %793 = vmatprep.subr.mxu0 0.0
        %794 = vmatpush1.xpose.msra.mxu0 0.0
        %795 = vmatprep.subr.mxu0 0.0
        %796 = vmatpush1.xpose.msra.mxu0 0.0
        %797 = vmatprep.subr.mxu0 0.0
        %798 = vmatpush1.xpose.msra.mxu0 0.0
        %799 = vmatprep.subr.mxu0 0.0
        %800 = vmatpush1.xpose.msra.mxu0 0.0
        %801 = vmatprep.subr.mxu0 0.0
        %802 = vmatpush1.xpose.msra.mxu0 0.0
        %803 = vmatprep.subr.mxu0 0.0
        %804 = vmatpush1.xpose.msra.mxu0 0.0
        %805 = vmatprep.subr.mxu0 0.0
        %806 = vmatpush1.xpose.msra.mxu0 0.0
        %807 = vmatprep.subr.mxu0 0.0
        %808 = vmatpush1.xpose.msra.mxu0 0.0
        %809 = vmatprep.subr.mxu0 0.0
        %810 = vmatpush1.xpose.msra.mxu0 0.0
        %811 = vmatprep.subr.mxu0 0.0
        %812 = vmatpush1.xpose.msra.mxu0 0.0
        %813 = vmatprep.subr.mxu0 0.0
        %814 = vmatpush1.xpose.msra.mxu0 0.0
        %815 = vmatprep.subr.mxu0 0.0
        %816 = vmatpush1.xpose.msra.mxu0 0.0
        %817 = vmatprep.subr.mxu0 0.0
        %818 = vmatpush1.xpose.msra.mxu0 0.0
        %819 = vmatprep.subr.mxu0 0.0
        %820 = vmatpush1.xpose.msra.mxu0 0.0
        %821 = vmatprep.subr.mxu0 0.0
        %822 = vmatpush1.xpose.msra.mxu0 0.0
        %823 = vmatprep.subr.mxu0 0.0
        %824 = vmatpush1.xpose.msra.mxu0 0.0
        %825 = vmatprep.subr.mxu0 0.0
        %826 = vmatpush1.xpose.msra.mxu0 0.0
        %827 = vmatprep.subr.mxu0 0.0
        %828 = vmatpush1.xpose.msra.mxu0 0.0
        %829 = vmatprep.subr.mxu0 0.0
        %830 = vmatpush1.xpose.msra.mxu0 0.0
        %831 = vmatprep.subr.mxu0 0.0
        %832 = vmatpush1.xpose.msra.mxu0 0.0
        %833 = vmatprep.subr.mxu0 0.0
        %834 = vmatpush1.xpose.msra.mxu0 0.0
        %835 = vmatprep.subr.mxu0 0.0
        %836 = vmatpush1.xpose.msra.mxu0 0.0
        %837 = vmatprep.subr.mxu0 0.0
        %838 = vmatpush1.xpose.msra.mxu0 0.0
        %839 = vmatprep.subr.mxu0 0.0
        %840 = vmatpush1.xpose.msra.mxu0 0.0
        %841 = vmatprep.subr.mxu0 0.0
        %842 = vmatpush1.xpose.msra.mxu0 0.0
        %843 = vmatprep.subr.mxu0 0.0
        %844 = vmatpush1.xpose.msra.mxu0 0.0
        %845 = vmatprep.subr.mxu0 0.0
        %846 = vmatpush1.xpose.msra.mxu0 0.0
        %847 = vmatprep.subr.mxu0 0.0
        %848 = vmatpush1.xpose.msra.mxu0 0.0
        %849 = vmatprep.subr.mxu0 0.0
        %850 = vmatpush1.xpose.msra.mxu0 0.0
        %851 = vmatprep.subr.mxu0 0.0
        %852 = vmatpush1.xpose.msra.mxu0 0.0
        %853 = vmatprep.subr.mxu0 0.0
        %854 = vmatpush1.xpose.msra.mxu0 0.0
        %855 = vmatprep.mubr.f32.mxu0 0.0
        %856 = vmatmul.mubr.f32.gmra.mrb[0].mxu0 %v787
        %v857 = vpop.f32.mrb[0].mxu0
        %v858 = vadd.f32 0.0, %v857
        %v859 = vpop.f32.mrb[0].mxu0
        %860 = vdwg.mxu0
        %v861 = vsel %vm303, %v858, -1e+30
        %v862 = vsel %vm307, %v861, -inf
        %863 = vmax.xlane.f32.xlu0 %v862
        %v864 = vpop.xlane.xlu0 %863
        %v865 = vsub.f32 %v861, %v864
        %v866 = vmul.f32 %v865, 1.442695
        %v867 = vpow.pop %v866
        %v868 = vsel %vm307, %v867, 0.0
        %869 = vadd.xlane.f32.xlu0 %v868
        %v870 = vpop.xlane.xlu0 %869
        %v871 = vrcp.pop %v870
        %v872 = vmul.f32 %v867, %v871
        %873 = vrot.lane.b32.xlu0 %v295, 48
        %v874 = vpop.permute.xlu0 %873
        %v877 = vsel %vm307, %v872, 0
        %879 = vmatprep.subr.mxu0 0.0
        %880 = vmatpush1.msra.mxu0 %v874
        %881 = vmatprep.subr.mxu0 0.0
        %882 = vmatpush1.msra.mxu0 0.0
        %883 = vmatprep.subr.mxu0 0.0
        %884 = vmatpush1.msra.mxu0 0.0
        %885 = vmatprep.subr.mxu0 0.0
        %886 = vmatpush1.msra.mxu0 0.0
        %887 = vmatprep.subr.mxu0 0.0
        %888 = vmatpush1.msra.mxu0 0.0
        %889 = vmatprep.subr.mxu0 0.0
        %890 = vmatpush1.msra.mxu0 0.0
        %891 = vmatprep.subr.mxu0 0.0
        %892 = vmatpush1.msra.mxu0 0.0
        %893 = vmatprep.subr.mxu0 0.0
        %894 = vmatpush1.msra.mxu0 0.0
        %895 = vmatprep.subr.mxu0 0.0
        %896 = vmatpush1.msra.mxu0 0.0
        %897 = vmatprep.subr.mxu0 0.0
        %898 = vmatpush1.msra.mxu0 0.0
        %899 = vmatprep.subr.mxu0 0.0
        %900 = vmatpush1.msra.mxu0 0.0
        %901 = vmatprep.subr.mxu0 0.0
        %902 = vmatpush1.msra.mxu0 0.0
        %903 = vmatprep.subr.mxu0 0.0
        %904 = vmatpush1.msra.mxu0 0.0
        %905 = vmatprep.subr.mxu0 0.0
        %906 = vmatpush1.msra.mxu0 0.0
        %907 = vmatprep.subr.mxu0 0.0
        %908 = vmatpush1.msra.mxu0 0.0
        %909 = vmatprep.subr.mxu0 0.0
        %910 = vmatpush1.msra.mxu0 0.0
        %911 = vmatprep.subr.mxu0 0.0
        %912 = vmatpush1.msra.mxu0 0.0
        %913 = vmatprep.subr.mxu0 0.0
        %914 = vmatpush1.msra.mxu0 0.0
        %915 = vmatprep.subr.mxu0 0.0
        %916 = vmatpush1.msra.mxu0 0.0
        %917 = vmatprep.subr.mxu0 0.0
        %918 = vmatpush1.msra.mxu0 0.0
        %919 = vmatprep.subr.mxu0 0.0
        %920 = vmatpush1.msra.mxu0 0.0
        %921 = vmatprep.subr.mxu0 0.0
        %922 = vmatpush1.msra.mxu0 0.0
        %923 = vmatprep.subr.mxu0 0.0
        %924 = vmatpush1.msra.mxu0 0.0
        %925 = vmatprep.subr.mxu0 0.0
        %926 = vmatpush1.msra.mxu0 0.0
        %927 = vmatprep.subr.mxu0 0.0
        %928 = vmatpush1.msra.mxu0 0.0
        %929 = vmatprep.subr.mxu0 0.0
        %930 = vmatpush1.msra.mxu0 0.0
        %931 = vmatprep.subr.mxu0 0.0
        %932 = vmatpush1.msra.mxu0 0.0
        %933 = vmatprep.subr.mxu0 0.0
        %934 = vmatpush1.msra.mxu0 0.0
        %935 = vmatprep.subr.mxu0 0.0
        %936 = vmatpush1.msra.mxu0 0.0
        %937 = vmatprep.subr.mxu0 0.0
        %938 = vmatpush1.msra.mxu0 0.0
        %939 = vmatprep.subr.mxu0 0.0
        %940 = vmatpush1.msra.mxu0 0.0
        %941 = vmatprep.subr.mxu0 0.0
        %942 = vmatpush1.msra.mxu0 0.0
        %943 = vmatprep.mubr.f32.mxu0 0.0
        %944 = vmatmul.mubr.f32.gmra.mrb[0].mxu0 %v877
        %v945 = vpop.f32.mrb[0].mxu0
        %v946 = vadd.f32 0.0, %v945
        %v947 = vpop.f32.mrb[0].mxu0
        %948 = vdwg.mxu0
        %v950 = vsel %vm307, %v946, 0
        %952 = vmatprep.subr.mxu0 0.0
        %953 = vmatpush1.msra.mxu0 %v222
        %954 = vmatprep.subr.mxu0 0.0
        %955 = vmatpush1.msra.mxu0 0.0
        %956 = vmatprep.subr.mxu0 0.0
        %957 = vmatpush1.msra.mxu0 0.0
        %958 = vmatprep.subr.mxu0 0.0
        %959 = vmatpush1.msra.mxu0 0.0
        %960 = vmatprep.subr.mxu0 0.0
        %961 = vmatpush1.msra.mxu0 0.0
        %962 = vmatprep.subr.mxu0 0.0
        %963 = vmatpush1.msra.mxu0 0.0
        %964 = vmatprep.subr.mxu0 0.0
        %965 = vmatpush1.msra.mxu0 0.0
        %966 = vmatprep.subr.mxu0 0.0
        %967 = vmatpush1.msra.mxu0 0.0
        %968 = vmatprep.subr.mxu0 0.0
        %969 = vmatpush1.msra.mxu0 0.0
        %970 = vmatprep.subr.mxu0 0.0
        %971 = vmatpush1.msra.mxu0 0.0
        %972 = vmatprep.subr.mxu0 0.0
        %973 = vmatpush1.msra.mxu0 0.0
        %974 = vmatprep.subr.mxu0 0.0
        %975 = vmatpush1.msra.mxu0 0.0
        %976 = vmatprep.subr.mxu0 0.0
        %977 = vmatpush1.msra.mxu0 0.0
        %978 = vmatprep.subr.mxu0 0.0
        %979 = vmatpush1.msra.mxu0 0.0
        %980 = vmatprep.subr.mxu0 0.0
        %981 = vmatpush1.msra.mxu0 0.0
        %982 = vmatprep.subr.mxu0 0.0
        %983 = vmatpush1.msra.mxu0 0.0
        %984 = vmatprep.subr.mxu0 0.0
        %985 = vmatpush1.msra.mxu0 0.0
        %986 = vmatprep.subr.mxu0 0.0
        %987 = vmatpush1.msra.mxu0 0.0
        %988 = vmatprep.subr.mxu0 0.0
        %989 = vmatpush1.msra.mxu0 0.0
        %990 = vmatprep.subr.mxu0 0.0
        %991 = vmatpush1.msra.mxu0 0.0
        %992 = vmatprep.subr.mxu0 0.0
        %993 = vmatpush1.msra.mxu0 0.0
        %994 = vmatprep.subr.mxu0 0.0
        %995 = vmatpush1.msra.mxu0 0.0
        %996 = vmatprep.subr.mxu0 0.0
        %997 = vmatpush1.msra.mxu0 0.0
        %998 = vmatprep.subr.mxu0 0.0
        %999 = vmatpush1.msra.mxu0 0.0
        %1000 = vmatprep.subr.mxu0 0.0
        %1001 = vmatpush1.msra.mxu0 0.0
        %1002 = vmatprep.subr.mxu0 0.0
        %1003 = vmatpush1.msra.mxu0 0.0
        %1004 = vmatprep.subr.mxu0 0.0
        %1005 = vmatpush1.msra.mxu0 0.0
        %1006 = vmatprep.subr.mxu0 0.0
        %1007 = vmatpush1.msra.mxu0 0.0
        %1008 = vmatprep.subr.mxu0 0.0
        %1009 = vmatpush1.msra.mxu0 0.0
        %1010 = vmatprep.subr.mxu0 0.0
        %1011 = vmatpush1.msra.mxu0 0.0
        %1012 = vmatprep.subr.mxu0 0.0
        %1013 = vmatpush1.msra.mxu0 0.0
        %1014 = vmatprep.subr.mxu0 0.0
        %1015 = vmatpush1.msra.mxu0 0.0
        %1016 = vmatprep.mubr.f32.mxu0 0.0
        %1017 = vmatmul.mubr.f32.gmra.mrb[0].mxu0 %v950
        %v1018 = vpop.f32.mrb[0].mxu0
        %v1019 = vadd.f32 0.0, %v1018
        %v1020 = vpop.f32.mrb[0].mxu0
        %1021 = vdwg.mxu0
        %v1022 = vadd.f32 %v780, %v1019
        %1023 = vrot.lane.b32.xlu0 %v298, 104
        %v1024 = vpop.permute.xlu0 %1023
        %1025 = vrot.lane.b32.xlu0 %v295, 72
        %v1026 = vpop.permute.xlu0 %1025
        %v1027 = vsel %vm307, %v1024, 0
        %v1029 = vsel %vm307, %v1026, 0
        %1031 = vmatprep.subr.mxu0 0.0
        %1032 = vmatpush1.xpose.msra.mxu0 %v1029
        %1033 = vmatprep.subr.mxu0 0.0
        %1034 = vmatpush1.xpose.msra.mxu0 0.0
        %1035 = vmatprep.subr.mxu0 0.0
        %1036 = vmatpush1.xpose.msra.mxu0 0.0
        %1037 = vmatprep.subr.mxu0 0.0
        %1038 = vmatpush1.xpose.msra.mxu0 0.0
        %1039 = vmatprep.subr.mxu0 0.0
        %1040 = vmatpush1.xpose.msra.mxu0 0.0
        %1041 = vmatprep.subr.mxu0 0.0
        %1042 = vmatpush1.xpose.msra.mxu0 0.0
        %1043 = vmatprep.subr.mxu0 0.0
        %1044 = vmatpush1.xpose.msra.mxu0 0.0
        %1045 = vmatprep.subr.mxu0 0.0
        %1046 = vmatpush1.xpose.msra.mxu0 0.0
        %1047 = vmatprep.subr.mxu0 0.0
        %1048 = vmatpush1.xpose.msra.mxu0 0.0
        %1049 = vmatprep.subr.mxu0 0.0
        %1050 = vmatpush1.xpose.msra.mxu0 0.0
        %1051 = vmatprep.subr.mxu0 0.0
        %1052 = vmatpush1.xpose.msra.mxu0 0.0
        %1053 = vmatprep.subr.mxu0 0.0
        %1054 = vmatpush1.xpose.msra.mxu0 0.0
        %1055 = vmatprep.subr.mxu0 0.0
        %1056 = vmatpush1.xpose.msra.mxu0 0.0
        %1057 = vmatprep.subr.mxu0 0.0
        %1058 = vmatpush1.xpose.msra.mxu0 0.0
        %1059 = vmatprep.subr.mxu0 0.0
        %1060 = vmatpush1.xpose.msra.mxu0 0.0
        %1061 = vmatprep.subr.mxu0 0.0
        %1062 = vmatpush1.xpose.msra.mxu0 0.0
        %1063 = vmatprep.subr.mxu0 0.0
        %1064 = vmatpush1.xpose.msra.mxu0 0.0
        %1065 = vmatprep.subr.mxu0 0.0
        %1066 = vmatpush1.xpose.msra.mxu0 0.0
        %1067 = vmatprep.subr.mxu0 0.0
        %1068 = vmatpush1.xpose.msra.mxu0 0.0
        %1069 = vmatprep.subr.mxu0 0.0
        %1070 = vmatpush1.xpose.msra.mxu0 0.0
        %1071 = vmatprep.subr.mxu0 0.0
        %1072 = vmatpush1.xpose.msra.mxu0 0.0
        %1073 = vmatprep.subr.mxu0 0.0
        %1074 = vmatpush1.xpose.msra.mxu0 0.0
        %1075 = vmatprep.subr.mxu0 0.0
        %1076 = vmatpush1.xpose.msra.mxu0 0.0
        %1077 = vmatprep.subr.mxu0 0.0
        %1078 = vmatpush1.xpose.msra.mxu0 0.0
        %1079 = vmatprep.subr.mxu0 0.0
        %1080 = vmatpush1.xpose.msra.mxu0 0.0
        %1081 = vmatprep.subr.mxu0 0.0
        %1082 = vmatpush1.xpose.msra.mxu0 0.0
        %1083 = vmatprep.subr.mxu0 0.0
        %1084 = vmatpush1.xpose.msra.mxu0 0.0
        %1085 = vmatprep.subr.mxu0 0.0
        %1086 = vmatpush1.xpose.msra.mxu0 0.0
        %1087 = vmatprep.subr.mxu0 0.0
        %1088 = vmatpush1.xpose.msra.mxu0 0.0
        %1089 = vmatprep.subr.mxu0 0.0
        %1090 = vmatpush1.xpose.msra.mxu0 0.0
        %1091 = vmatprep.subr.mxu0 0.0
        %1092 = vmatpush1.xpose.msra.mxu0 0.0
        %1093 = vmatprep.subr.mxu0 0.0
        %1094 = vmatpush1.xpose.msra.mxu0 0.0
        %1095 = vmatprep.mubr.f32.mxu0 0.0
        %1096 = vmatmul.mubr.f32.gmra.mrb[0].mxu0 %v1027
        %v1097 = vpop.f32.mrb[0].mxu0
        %v1098 = vadd.f32 0.0, %v1097
        %v1099 = vpop.f32.mrb[0].mxu0
        %1100 = vdwg.mxu0
        %v1101 = vsel %vm303, %v1098, -1e+30
        %v1102 = vsel %vm307, %v1101, -inf
        %1103 = vmax.xlane.f32.xlu0 %v1102
        %v1104 = vpop.xlane.xlu0 %1103
        %v1105 = vsub.f32 %v1101, %v1104
        %v1106 = vmul.f32 %v1105, 1.442695
        %v1107 = vpow.pop %v1106
        %v1108 = vsel %vm307, %v1107, 0.0
        %1109 = vadd.xlane.f32.xlu0 %v1108
        %v1110 = vpop.xlane.xlu0 %1109
        %v1111 = vrcp.pop %v1110
        %v1112 = vmul.f32 %v1107, %v1111
        %1113 = vrot.lane.b32.xlu0 %v295, 40
        %v1114 = vpop.permute.xlu0 %1113
        %v1117 = vsel %vm307, %v1112, 0
        %1119 = vmatprep.subr.mxu0 0.0
        %1120 = vmatpush1.msra.mxu0 %v1114
        %1121 = vmatprep.subr.mxu0 0.0
        %1122 = vmatpush1.msra.mxu0 0.0
        %1123 = vmatprep.subr.mxu0 0.0
        %1124 = vmatpush1.msra.mxu0 0.0
        %1125 = vmatprep.subr.mxu0 0.0
        %1126 = vmatpush1.msra.mxu0 0.0
        %1127 = vmatprep.subr.mxu0 0.0
        %1128 = vmatpush1.msra.mxu0 0.0
        %1129 = vmatprep.subr.mxu0 0.0
        %1130 = vmatpush1.msra.mxu0 0.0
        %1131 = vmatprep.subr.mxu0 0.0
        %1132 = vmatpush1.msra.mxu0 0.0
        %1133 = vmatprep.subr.mxu0 0.0
        %1134 = vmatpush1.msra.mxu0 0.0
        %1135 = vmatprep.subr.mxu0 0.0
        %1136 = vmatpush1.msra.mxu0 0.0
        %1137 = vmatprep.subr.mxu0 0.0
        %1138 = vmatpush1.msra.mxu0 0.0
        %1139 = vmatprep.subr.mxu0 0.0
        %1140 = vmatpush1.msra.mxu0 0.0
        %1141 = vmatprep.subr.mxu0 0.0
        %1142 = vmatpush1.msra.mxu0 0.0
        %1143 = vmatprep.subr.mxu0 0.0
        %1144 = vmatpush1.msra.mxu0 0.0
        %1145 = vmatprep.subr.mxu0 0.0
        %1146 = vmatpush1.msra.mxu0 0.0
        %1147 = vmatprep.subr.mxu0 0.0
        %1148 = vmatpush1.msra.mxu0 0.0
        %1149 = vmatprep.subr.mxu0 0.0
        %1150 = vmatpush1.msra.mxu0 0.0
        %1151 = vmatprep.subr.mxu0 0.0
        %1152 = vmatpush1.msra.mxu0 0.0
        %1153 = vmatprep.subr.mxu0 0.0
        %1154 = vmatpush1.msra.mxu0 0.0
        %1155 = vmatprep.subr.mxu0 0.0
        %1156 = vmatpush1.msra.mxu0 0.0
        %1157 = vmatprep.subr.mxu0 0.0
        %1158 = vmatpush1.msra.mxu0 0.0
        %1159 = vmatprep.subr.mxu0 0.0
        %1160 = vmatpush1.msra.mxu0 0.0
        %1161 = vmatprep.subr.mxu0 0.0
        %1162 = vmatpush1.msra.mxu0 0.0
        %1163 = vmatprep.subr.mxu0 0.0
        %1164 = vmatpush1.msra.mxu0 0.0
        %1165 = vmatprep.subr.mxu0 0.0
        %1166 = vmatpush1.msra.mxu0 0.0
        %1167 = vmatprep.subr.mxu0 0.0
        %1168 = vmatpush1.msra.mxu0 0.0
        %1169 = vmatprep.subr.mxu0 0.0
        %1170 = vmatpush1.msra.mxu0 0.0
        %1171 = vmatprep.subr.mxu0 0.0
        %1172 = vmatpush1.msra.mxu0 0.0
        %1173 = vmatprep.subr.mxu0 0.0
        %1174 = vmatpush1.msra.mxu0 0.0
        %1175 = vmatprep.subr.mxu0 0.0
        %1176 = vmatpush1.msra.mxu0 0.0
        %1177 = vmatprep.subr.mxu0 0.0
        %1178 = vmatpush1.msra.mxu0 0.0
        %1179 = vmatprep.subr.mxu0 0.0
        %1180 = vmatpush1.msra.mxu0 0.0
        %1181 = vmatprep.subr.mxu0 0.0
        %1182 = vmatpush1.msra.mxu0 0.0
        %1183 = vmatprep.mubr.f32.mxu0 0.0
        %1184 = vmatmul.mubr.f32.gmra.mrb[0].mxu0 %v1117
        %v1185 = vpop.f32.mrb[0].mxu0
        %v1186 = vadd.f32 0.0, %v1185
        %v1187 = vpop.f32.mrb[0].mxu0
        %1188 = vdwg.mxu0
        %v1190 = vsel %vm307, %v1186, 0
        %1192 = vmatprep.subr.mxu0 0.0
        %1193 = vmatpush1.msra.mxu0 %v223
        %1194 = vmatprep.subr.mxu0 0.0
        %1195 = vmatpush1.msra.mxu0 0.0
        %1196 = vmatprep.subr.mxu0 0.0
        %1197 = vmatpush1.msra.mxu0 0.0
        %1198 = vmatprep.subr.mxu0 0.0
        %1199 = vmatpush1.msra.mxu0 0.0
        %1200 = vmatprep.subr.mxu0 0.0
        %1201 = vmatpush1.msra.mxu0 0.0
        %1202 = vmatprep.subr.mxu0 0.0
        %1203 = vmatpush1.msra.mxu0 0.0
        %1204 = vmatprep.subr.mxu0 0.0
        %1205 = vmatpush1.msra.mxu0 0.0
        %1206 = vmatprep.subr.mxu0 0.0
        %1207 = vmatpush1.msra.mxu0 0.0
        %1208 = vmatprep.subr.mxu0 0.0
        %1209 = vmatpush1.msra.mxu0 0.0
        %1210 = vmatprep.subr.mxu0 0.0
        %1211 = vmatpush1.msra.mxu0 0.0
        %1212 = vmatprep.subr.mxu0 0.0
        %1213 = vmatpush1.msra.mxu0 0.0
        %1214 = vmatprep.subr.mxu0 0.0
        %1215 = vmatpush1.msra.mxu0 0.0
        %1216 = vmatprep.subr.mxu0 0.0
        %1217 = vmatpush1.msra.mxu0 0.0
        %1218 = vmatprep.subr.mxu0 0.0
        %1219 = vmatpush1.msra.mxu0 0.0
        %1220 = vmatprep.subr.mxu0 0.0
        %1221 = vmatpush1.msra.mxu0 0.0
        %1222 = vmatprep.subr.mxu0 0.0
        %1223 = vmatpush1.msra.mxu0 0.0
        %1224 = vmatprep.subr.mxu0 0.0
        %1225 = vmatpush1.msra.mxu0 0.0
        %1226 = vmatprep.subr.mxu0 0.0
        %1227 = vmatpush1.msra.mxu0 0.0
        %1228 = vmatprep.subr.mxu0 0.0
        %1229 = vmatpush1.msra.mxu0 0.0
        %1230 = vmatprep.subr.mxu0 0.0
        %1231 = vmatpush1.msra.mxu0 0.0
        %1232 = vmatprep.subr.mxu0 0.0
        %1233 = vmatpush1.msra.mxu0 0.0
        %1234 = vmatprep.subr.mxu0 0.0
        %1235 = vmatpush1.msra.mxu0 0.0
        %1236 = vmatprep.subr.mxu0 0.0
        %1237 = vmatpush1.msra.mxu0 0.0
        %1238 = vmatprep.subr.mxu0 0.0
        %1239 = vmatpush1.msra.mxu0 0.0
        %1240 = vmatprep.subr.mxu0 0.0
        %1241 = vmatpush1.msra.mxu0 0.0
        %1242 = vmatprep.subr.mxu0 0.0
        %1243 = vmatpush1.msra.mxu0 0.0
        %1244 = vmatprep.subr.mxu0 0.0
        %1245 = vmatpush1.msra.mxu0 0.0
        %1246 = vmatprep.subr.mxu0 0.0
        %1247 = vmatpush1.msra.mxu0 0.0
        %1248 = vmatprep.subr.mxu0 0.0
        %1249 = vmatpush1.msra.mxu0 0.0
        %1250 = vmatprep.subr.mxu0 0.0
        %1251 = vmatpush1.msra.mxu0 0.0
        %1252 = vmatprep.subr.mxu0 0.0
        %1253 = vmatpush1.msra.mxu0 0.0
        %1254 = vmatprep.subr.mxu0 0.0
        %1255 = vmatpush1.msra.mxu0 0.0
        %1256 = vmatprep.mubr.f32.mxu0 0.0
        %1257 = vmatmul.mubr.f32.gmra.mrb[0].mxu0 %v1190
        %v1258 = vpop.f32.mrb[0].mxu0
        %v1259 = vadd.f32 0.0, %v1258
        %v1260 = vpop.f32.mrb[0].mxu0
        %1261 = vdwg.mxu0
        %v1262 = vadd.f32 %v1022, %v1259
        %1263 = vst.msk [vmem:[%s214] sm:$0xff] %vm224, %v1262
        %s1264 = sand.u32 %s97, 1
        %s1265 = scalar_lea.sflag [#allocation4], %s1264
        %s1266 = sand.u32 %s97, 1
        %s1267 = smul.addr %s1266, 8
        %s1268 = scalar_lea.vmem [#allocation8], %s1267
        // Predicated region
        $region45: #{tpu_custom_call.1} parent=31 // pred_check
          %p1269 = pneg %p107
        $region46: #{tpu_custom_call.1} parent=31 // pred_check_branch
          %1271 = sbr.rel (%p1269) target = $region48
        $region47: #{tpu_custom_call.1} parent=31 // pred_region
          %s1273 = ssub.s32 128, 128
          %1274 = vsyncadd %s1265, %s1273
          %s1275 = smul.addr %s21, 128
          %s1276 = scalar_lea.hbm %s3, %s1275
          %s1278 = sshll.u32 %s1268, 4
          %s1279 = int_to_ptr.vmem [resolvable:$true] %s1278
          %1281 = dma.vmem_to_hbm [thread:$0]  %s1279, 128, %s1276, %s1265
        $region48: #{tpu_custom_call.1} parent=31 // pred_fallthru
          _
      $region32: #{tpu_custom_call.1} parent=5 // pred_fallthru
        _
      %p1282 = scmp.le.s32.totalorder 2, %s16
      // Predicated region
      $region49: #{tpu_custom_call.1} parent=5 // pred_check
        %p1283 = pneg %p1282
      $region50: #{tpu_custom_call.1} parent=5 // pred_check_branch
        %1285 = sbr.rel (%p1283) target = $region52
      $region51: #{tpu_custom_call.1} parent=5 // pred_region
        %s1286 = ssub.s32 %s16, 2
        // Predicated region
        $region53: #{tpu_custom_call.1} parent=51 // pred_check
          %p1287 = pneg %p113
        $region54: #{tpu_custom_call.1} parent=51 // pred_check_branch
          %1289 = sbr.rel (%p1287) target = $region56
        $region55: #{tpu_custom_call.1} parent=51 // pred_region
          %s1290 = sand.u32 %s98, 1
          %s1291 = scalar_lea.sflag [#allocation4], %s1290
          %s1292 = sand.u32 %s98, 1
          %s1293 = smul.addr %s1292, 8
          %s1294 = scalar_lea.vmem [#allocation8], %s1293
          %1295 = dma.done %s1291, 128
        $region56: #{tpu_custom_call.1} parent=51 // pred_fallthru
          _
      $region52: #{tpu_custom_call.1} parent=5 // pred_fallthru
        _
    $region6: #{tpu_custom_call.1} parent=1 // loop_footer
      %s20 = sadd.s32 1, %s16
    $region7: #{tpu_custom_call.1} parent=1 // loop_footer_branch
      %15 = sbr.rel target = $region3
    $region8: #{tpu_custom_call.1} parent=1 // loop_exit
      _
    %1296 = vsyncpa [#allocation3], 1
    %s1297 = scalar_lea.sflag [#allocation3], 1
    %1298 = vsyncpa %s1297, 1
    %1299 = vsyncpa [#allocation6], 1
    %1300 = vsyncpa [#allocation4], 1
    %s1301 = scalar_lea.sflag [#allocation4], 1
    %1302 = vsyncpa %s1301, 1

</llo_original>
